<compile_context>
chip_gen: v7x
topology: tpu7x:2x2x1
jax: 0.10.0
libtpu: 0.0.40
codegen_flags: <defaults>
</compile_context>

<pallas_src>
import functools

import jax
import jax.numpy as jnp
from jax import lax
from jax.experimental import pallas as pl
from jax.experimental.pallas import tpu as pltpu


def _round_up(x, m):
    return (x + m - 1) // m * m


def textsubnet_kernel(x_ref, wih_ref, whh_ref, b_ref, w1_ref, b1_ref,
                      out_ref, gx_ref, h_ref, c_ref):
    """Grid = (batch block b ["parallel"], time chunk tc ["arbitrary"]).

    x_ref   : (TC, BB, in)    bf16  time-major input chunk for this block
    wih_ref : (in, 4*HP)      bf16  W_ih^T, per-gate lane-padded to HP
    whh_ref : (HP, 4*HP)      bf16  W_hh^T, per-gate lane-padded
    b_ref   : (1, 4*HP)       f32   b_ih + b_hh, per-gate lane-padded
    w1_ref  : (HP, OUT_PAD)   bf16  linear weight^T, padded
    b1_ref  : (1, OUT_PAD)    f32
    out_ref : (BB, OUT_PAD)   f32   written once, at the last time chunk
    gx_ref  : (TC, BB, 4*HP)  f32   scratch: precomputed input-gate terms
    h_ref, c_ref : (BB, HP)   f32   scratch: LSTM state carried across chunks
    """
    tc_idx = pl.program_id(1)
    last_tc = pl.num_programs(1) - 1
    TC, BB, IN = x_ref.shape
    HP = whh_ref.shape[0]

    @pl.when(tc_idx == 0)
    def _():
        # Exactness of the lane/batch zero-padding relies on h0 == c0 == 0 and
        # zero-padded W_hh rows/cols: sigmoid(0)=0.5 always multiplies a zero
        # carry, so padded lanes stay exactly zero. Do not seed nonzero state.
        h_ref[...] = jnp.zeros_like(h_ref)
        c_ref[...] = jnp.zeros_like(c_ref)

    # Hoisted input projection for the whole chunk: one large bf16 MXU matmul
    # with f32 accumulation, kept off the serial critical path. BB is a
    # multiple of 16, so the (TC, BB, IN) -> (TC*BB, IN) collapse is a clean
    # layout-preserving reshape for bf16.
    x2d = x_ref[...].reshape(TC * BB, IN)
    gx2d = (jnp.dot(x2d, wih_ref[...], preferred_element_type=jnp.float32)
            + b_ref[...])
    gx_ref[...] = gx2d.reshape(TC, BB, 4 * HP)

    # Serial recurrence: only h @ W_hh^T sits on the latency-critical chain.
    # TODO(synk): W_hh could be held resident in MXU weight staging registers
    # across steps (pltpu.matmul_push_rhs / matmul_acc_lhs / matmul_pop) to
    # drop the per-step RHS push; kept as jnp.dot for lowering robustness.
    def step(t, carry):
        h, c = carry
        g = gx_ref[t] + jnp.dot(h.astype(whh_ref.dtype), whh_ref[...],
                                preferred_element_type=jnp.float32)
        # PyTorch gate order [i, f, g, o]; each gate block is 128-lane aligned.
        i_g = jax.nn.sigmoid(g[:, 0 * HP:1 * HP])
        f_g = jax.nn.sigmoid(g[:, 1 * HP:2 * HP])
        g_g = jnp.tanh(g[:, 2 * HP:3 * HP])
        o_g = jax.nn.sigmoid(g[:, 3 * HP:4 * HP])
        c_new = f_g * c + i_g * g_g
        h_new = o_g * jnp.tanh(c_new)
        return (h_new, c_new)

    # Bounded unroll: keeps MXU/EUP/VPU overlap visible to the scheduler
    # without blowing vreg live ranges when BB / TC are large.
    h, c = lax.fori_loop(0, TC, step, (h_ref[...], c_ref[...]),
                         unroll=min(TC, 8))
    h_ref[...] = h
    c_ref[...] = c

    @pl.when(tc_idx == last_tc)
    def _():
        # TODO(synk): nn.Dropout is identity in eval mode; training-mode
        # dropout would use pltpu.prng_seed / pltpu.prng_random_bits here.
        out_ref[...] = (
            jnp.dot(h.astype(w1_ref.dtype), w1_ref[...],
                    preferred_element_type=jnp.float32)
            + b1_ref[...])


def text_subnet_forward(x_btd, w_ih, w_hh, b_ih, b_hh, w1, b1, *,
                        batch_block=128, time_chunk=64):
    """x_btd: (B, T, in_size), PyTorch batch_first input. Returns (B, out)."""
    B, T, in_size = x_btd.shape
    H = w_hh.shape[1]
    out_size = w1.shape[0]

    HP = _round_up(H, 128)                 # lane-aligned gate width
    OUT_PAD = _round_up(out_size, 128)     # lane-dense output store

    # Batch block: 16-row aligned (bf16 sublane packing) and large enough to
    # feed the MXU on the serial recurrence. If a single block would cover the
    # whole batch and B allows it, split into two so both v7x TensorCores get
    # work on the "parallel" batch axis (no effect on v5e/v6e).
    BB = min(_round_up(batch_block, 16), _round_up(B, 16))
    if _round_up(B, BB) // BB < 2 and B > 16:
        BB = _round_up(-(-B // 2), 16)
    B_pad = _round_up(B, BB)
    num_blocks = B_pad // BB

    # Time chunking bounds gx/x VMEM residency (v7x: 64 MiB VMEM). No zero
    # padding of T (extra LSTM steps would corrupt h/c), so use the largest
    # divisor of T not exceeding the target chunk.
    TC = max(d for d in range(1, min(time_chunk, T) + 1) if T % d == 0)
    num_t_chunks = T // TC

    # Single relayout of x: time-major + batch pad + bf16 cast.
    x_tbd = jnp.transpose(x_btd, (1, 0, 2)).astype(jnp.bfloat16)   # (T, B, in)
    x_tbd = jnp.pad(x_tbd, ((0, 0), (0, B_pad - B), (0, 0)))       # (T, Bp, in)

    def pad_gate_cols(w_t):
        # w_t: (rows, 4H), PyTorch gate order [i,f,g,o] along the columns.
        rows = w_t.shape[0]
        w_g = w_t.reshape(rows, 4, H)
        w_g = jnp.pad(w_g, ((0, 0), (0, 0), (0, HP - H)))
        return w_g.reshape(rows, 4 * HP)

    # bf16 matmul operands, f32 accumulation in-kernel; biases stay f32.
    wih_t = pad_gate_cols(
        jnp.transpose(w_ih).astype(jnp.float32)).astype(jnp.bfloat16)
    whh_t = pad_gate_cols(jnp.transpose(w_hh).astype(jnp.float32))
    whh_t = jnp.pad(whh_t, ((0, HP - H), (0, 0))).astype(jnp.bfloat16)
    bias = pad_gate_cols((b_ih + b_hh).astype(jnp.float32)[None, :])
    w1_t = jnp.pad(jnp.transpose(w1).astype(jnp.float32),
                   ((0, HP - H), (0, OUT_PAD - out_size))).astype(jnp.bfloat16)
    b1_r = jnp.pad(b1.astype(jnp.float32)[None, :],
                   ((0, 0), (0, OUT_PAD - out_size)))

    # Generation-dependent VMEM limit: ~3/4 of physical capacity, capped at
    # 96 MiB (v5e/v6e -> 96 MiB, v7x -> 48 MiB), floor at the 32 MiB default.
    try:
        vmem_cap = int(pltpu.get_tpu_info().vmem_capacity_bytes)
    except Exception:
        vmem_cap = 64 * 1024 * 1024
    vmem_limit = max(32 * 1024 * 1024,
                     min(vmem_cap * 3 // 4, 96 * 1024 * 1024))

    y_pad = pl.pallas_call(
        textsubnet_kernel,
        out_shape=jax.ShapeDtypeStruct((B_pad, OUT_PAD), jnp.float32),
        grid_spec=pltpu.PrefetchScalarGridSpec(
            num_scalar_prefetch=0,
            grid=(num_blocks, num_t_chunks),
            in_specs=[
                # x: one (TC, BB, in) chunk per (batch block, time chunk)
                pl.BlockSpec((TC, BB, in_size), lambda b, t: (t, b, 0)),
                # TODO(synk): pipeline_mode=pl.Buffered(1) on these constant-
                # index weight specs would avoid double-buffering VMEM once
                # HP / in_size grow; omitted for lowering robustness.
                pl.BlockSpec((in_size, 4 * HP), lambda b, t: (0, 0)),  # W_ih^T
                pl.BlockSpec((HP, 4 * HP), lambda b, t: (0, 0)),       # W_hh^T
                pl.BlockSpec((1, 4 * HP), lambda b, t: (0, 0)),        # bias
                pl.BlockSpec((HP, OUT_PAD), lambda b, t: (0, 0)),      # W1^T
                pl.BlockSpec((1, OUT_PAD), lambda b, t: (0, 0)),       # b1
            ],
            out_specs=pl.BlockSpec((BB, OUT_PAD), lambda b, t: (b, 0)),
            scratch_shapes=[
                pltpu.VMEM((TC, BB, 4 * HP), jnp.float32),   # gx chunk
                pltpu.VMEM((BB, HP), jnp.float32),           # h carry
                pltpu.VMEM((BB, HP), jnp.float32),           # c carry
            ],
        ),
        compiler_params=pltpu.CompilerParams(
            # Batch blocks independent -> megacore-shardable on v7x; time
            # chunks carry h/c -> "arbitrary".
            dimension_semantics=("parallel", "arbitrary"),
            vmem_limit_bytes=vmem_limit,
        ),
    )(x_tbd, wih_t, whh_t, bias, w1_t, b1_r)

    # NOTE: PyTorch h_n.squeeze() would also drop the batch dim when B == 1;
    # we always return (B, out_size).
    return y_pad[:B, :out_size]


def _reference_forward(x_btd, w_ih, w_hh, b_ih, b_hh, w1, b1):
    """Pure-JAX f32 reference of the same LSTM + linear (sanity check)."""
    B, T, _ = x_btd.shape
    H = w_hh.shape[1]
    h = jnp.zeros((B, H), jnp.float32)
    c = jnp.zeros((B, H), jnp.float32)
    for t in range(T):
        gates = x_btd[:, t, :] @ w_ih.T + h @ w_hh.T + b_ih + b_hh
        i_g = jax.nn.sigmoid(gates[:, 0 * H:1 * H])
        f_g = jax.nn.sigmoid(gates[:, 1 * H:2 * H])
        g_g = jnp.tanh(gates[:, 2 * H:3 * H])
        o_g = jax.nn.sigmoid(gates[:, 3 * H:4 * H])
        c = f_g * c + i_g * g_g
        h = o_g * jnp.tanh(c)
    return h @ w1.T + b1


if __name__ == "__main__":
    # Small shapes consistent with TextSubNet.forward: x (B, T, in_size)
    B, T, in_size, hidden, out_size = 4, 8, 16, 32, 16

    key = jax.random.PRNGKey(0)
    k_x, k_wih, k_whh, k_bih, k_bhh, k_w1, k_b1 = jax.random.split(key, 7)

    # Deterministic PyTorch-style uniform(-1/sqrt(H), 1/sqrt(H)) init.
    s = 1.0 / jnp.sqrt(float(hidden))
    x = jax.random.normal(k_x, (B, T, in_size), jnp.float32)
    w_ih = jax.random.uniform(k_wih, (4 * hidden, in_size), jnp.float32, -s, s)
    w_hh = jax.random.uniform(k_whh, (4 * hidden, hidden), jnp.float32, -s, s)
    b_ih = jax.random.uniform(k_bih, (4 * hidden,), jnp.float32, -s, s)
    b_hh = jax.random.uniform(k_bhh, (4 * hidden,), jnp.float32, -s, s)
    w1 = jax.random.uniform(k_w1, (out_size, hidden), jnp.float32, -s, s)
    b1 = jax.random.uniform(k_b1, (out_size,), jnp.float32, -s, s)

    y = text_subnet_forward(x, w_ih, w_hh, b_ih, b_hh, w1, b1)
    jax.block_until_ready(y)

    y_ref = _reference_forward(x, w_ih, w_hh, b_ih, b_hh, w1, b1)
    assert y.shape == (B, out_size)
    # bf16 matmul operands (f32 accumulation) vs. f32 reference -> ~1e-2 tol.
    assert jnp.allclose(y, y_ref, atol=3e-2, rtol=3e-2), "mismatch vs reference"

    print("KERNEL_OK")
</pallas_src>

<mosaic_0001>
module attributes {stable_mosaic.version = 11 : i64} {
  func.func @textsubnet_kernel(%arg0: i32, %arg1: i32, %arg2: memref<8x16x16xbf16, #tpu.memory_space<vmem>>, %arg3: memref<16x512xbf16, #tpu.memory_space<vmem>>, %arg4: memref<128x512xbf16, #tpu.memory_space<vmem>>, %arg5: memref<1x512xf32, #tpu.memory_space<vmem>>, %arg6: memref<128x128xbf16, #tpu.memory_space<vmem>>, %arg7: memref<1x128xf32, #tpu.memory_space<vmem>>, %arg8: memref<16x128xf32, #tpu.memory_space<vmem>>, %arg9: memref<8x16x512xf32, #tpu.memory_space<vmem>>, %arg10: memref<16x128xf32, #tpu.memory_space<vmem>>, %arg11: memref<16x128xf32, #tpu.memory_space<vmem>>) attributes {dimension_semantics = [#tpu.dimension_semantics<parallel>, #tpu.dimension_semantics<arbitrary>], iteration_bounds = array<i64: 1, 1>, scalar_prefetch = 0 : i64, scratch_operands = 3 : i64, tpu.core_type = #tpu.core_type<tc>, window_params = [{transform_indices = @transform_0, window_bounds = array<i64: 8, 16, 16>}, {pipeline_mode = #tpu.pipeline_mode<synchronous>, transform_indices = @transform_1, window_bounds = array<i64: 16, 512>}, {pipeline_mode = #tpu.pipeline_mode<synchronous>, transform_indices = @transform_2, window_bounds = array<i64: 128, 512>}, {pipeline_mode = #tpu.pipeline_mode<synchronous>, transform_indices = @transform_3, window_bounds = array<i64: 1, 512>}, {pipeline_mode = #tpu.pipeline_mode<synchronous>, transform_indices = @transform_4, window_bounds = array<i64: 128, 128>}, {pipeline_mode = #tpu.pipeline_mode<synchronous>, transform_indices = @transform_5, window_bounds = array<i64: 1, 128>}, {transform_indices = @transform_6, window_bounds = array<i64: 16, 128>}]} {
    %c0_i32 = arith.constant 0 : i32
    %0 = arith.cmpi eq, %arg1, %c0_i32 : i32
    %1 = arith.extui %0 : i1 to i32
    %c0_i32_0 = arith.constant 0 : i32
    %2 = arith.cmpi ne, %1, %c0_i32_0 : i32
    scf.if %2 {
      %cst_85 = arith.constant 0.000000e+00 : f32
      %275 = vector.broadcast %cst_85 : f32 to vector<16x128xf32>
      %c0_86 = arith.constant 0 : index
      %c0_87 = arith.constant 0 : index
      %276 = vector.load %arg10[%c0_86, %c0_87] : memref<16x128xf32, #tpu.memory_space<vmem>>, vector<16x128xf32>
      tpu.vector_store %arg10[%c0_86, %c0_87], %275 {strides = array<i32>} : memref<16x128xf32, #tpu.memory_space<vmem>>, vector<16x128xf32>,
      %cst_88 = arith.constant 0.000000e+00 : f32
      %277 = vector.broadcast %cst_88 : f32 to vector<16x128xf32>
      %c0_89 = arith.constant 0 : index
      %c0_90 = arith.constant 0 : index
      %278 = vector.load %arg11[%c0_89, %c0_90] : memref<16x128xf32, #tpu.memory_space<vmem>>, vector<16x128xf32>
      tpu.vector_store %arg11[%c0_89, %c0_90], %277 {strides = array<i32>} : memref<16x128xf32, #tpu.memory_space<vmem>>, vector<16x128xf32>,
    } else {
    }
    %c0 = arith.constant 0 : index
    %c0_1 = arith.constant 0 : index
    %c0_2 = arith.constant 0 : index
    %3 = vector.load %arg2[%c0, %c0_1, %c0_2] : memref<8x16x16xbf16, #tpu.memory_space<vmem>>, vector<8x16x16xbf16>
    %4 = vector.shape_cast %3 : vector<8x16x16xbf16> to vector<128x16xbf16>
    %c0_3 = arith.constant 0 : index
    %c0_4 = arith.constant 0 : index
    %5 = vector.load %arg3[%c0_3, %c0_4] : memref<16x512xbf16, #tpu.memory_space<vmem>>, vector<16x512xbf16>
    %cst = arith.constant dense<0.000000e+00> : vector<128x512xf32>
    %6 = tpu.matmul %4, %5, %cst {dimension_numbers = #tpu.dot_dimension_numbers<[1], [0], [0], [1], [0, 0, 1, 1], [], []>} : vector<128x16xbf16>, vector<16x512xbf16>, vector<128x512xf32> -> vector<128x512xf32>
    %c0_5 = arith.constant 0 : index
    %c0_6 = arith.constant 0 : index
    %7 = vector.load %arg5[%c0_5, %c0_6] : memref<1x512xf32, #tpu.memory_space<vmem>>, vector<1x512xf32>
    %8 = vector.broadcast %7 : vector<1x512xf32> to vector<128x512xf32>
    %9 = arith.addf %6, %8 : vector<128x512xf32>
    %10 = vector.shape_cast %9 : vector<128x512xf32> to vector<8x16x512xf32>
    %c0_7 = arith.constant 0 : index
    %c0_8 = arith.constant 0 : index
    %c0_9 = arith.constant 0 : index
    %11 = vector.load %arg9[%c0_7, %c0_8, %c0_9] : memref<8x16x512xf32, #tpu.memory_space<vmem>>, vector<8x16x512xf32>
    tpu.vector_store %arg9[%c0_7, %c0_8, %c0_9], %10 {strides = array<i32>} : memref<8x16x512xf32, #tpu.memory_space<vmem>>, vector<8x16x512xf32>,
    %c0_10 = arith.constant 0 : index
    %c0_11 = arith.constant 0 : index
    %12 = vector.load %arg10[%c0_10, %c0_11] : memref<16x128xf32, #tpu.memory_space<vmem>>, vector<16x128xf32>
    %c0_12 = arith.constant 0 : index
    %c0_13 = arith.constant 0 : index
    %13 = vector.load %arg11[%c0_12, %c0_13] : memref<16x128xf32, #tpu.memory_space<vmem>>, vector<16x128xf32>
    %c0_i32_14 = arith.constant 0 : i32
    %14 = arith.index_cast %c0_i32_14 : i32 to index
    %c0_15 = arith.constant 0 : index
    %c0_16 = arith.constant 0 : index
    %15 = vector.load %arg9[%14, %c0_15, %c0_16] : memref<8x16x512xf32, #tpu.memory_space<vmem>>, vector<1x16x512xf32>
    %16 = vector.shape_cast %15 : vector<1x16x512xf32> to vector<16x512xf32>
    %17 = arith.truncf %12 : vector<16x128xf32> to vector<16x128xbf16>
    %c0_17 = arith.constant 0 : index
    %c0_18 = arith.constant 0 : index
    %18 = vector.load %arg4[%c0_17, %c0_18] : memref<128x512xbf16, #tpu.memory_space<vmem>>, vector<128x512xbf16>
    %cst_19 = arith.constant dense<0.000000e+00> : vector<16x512xf32>
    %19 = tpu.matmul %17, %18, %cst_19 {dimension_numbers = #tpu.dot_dimension_numbers<[1], [0], [0], [1], [0, 0, 1, 1], [], []>} : vector<16x128xbf16>, vector<128x512xbf16>, vector<16x512xf32> -> vector<16x512xf32>
    %20 = arith.addf %16, %19 : vector<16x512xf32>
    %21 = vector.extract_strided_slice %20 {offsets = [0, 0], sizes = [16, 128], strides = [1, 1]} : vector<16x512xf32> to vector<16x128xf32>
    %22 = arith.negf %21 : vector<16x128xf32>
    %23 = math.exp %22 : vector<16x128xf32>
    %cst_20 = arith.constant 1.000000e+00 : f32
    %24 = vector.broadcast %cst_20 : f32 to vector<16x128xf32>
    %25 = arith.addf %24, %23 : vector<16x128xf32>
    %26 = arith.divf %24, %25 : vector<16x128xf32>
    %27 = vector.extract_strided_slice %20 {offsets = [0, 128], sizes = [16, 128], strides = [1, 1]} : vector<16x512xf32> to vector<16x128xf32>
    %28 = arith.negf %27 : vector<16x128xf32>
    %29 = math.exp %28 : vector<16x128xf32>
    %cst_21 = arith.constant 1.000000e+00 : f32
    %30 = vector.broadcast %cst_21 : f32 to vector<16x128xf32>
    %31 = arith.addf %30, %29 : vector<16x128xf32>
    %32 = arith.divf %30, %31 : vector<16x128xf32>
    %33 = vector.extract_strided_slice %20 {offsets = [0, 256], sizes = [16, 128], strides = [1, 1]} : vector<16x512xf32> to vector<16x128xf32>
    %34 = math.tanh %33 : vector<16x128xf32>
    %35 = vector.extract_strided_slice %20 {offsets = [0, 384], sizes = [16, 128], strides = [1, 1]} : vector<16x512xf32> to vector<16x128xf32>
    %36 = arith.negf %35 : vector<16x128xf32>
    %37 = math.exp %36 : vector<16x128xf32>
    %cst_22 = arith.constant 1.000000e+00 : f32
    %38 = vector.broadcast %cst_22 : f32 to vector<16x128xf32>
    %39 = arith.addf %38, %37 : vector<16x128xf32>
    %40 = arith.divf %38, %39 : vector<16x128xf32>
    %41 = arith.mulf %32, %13 : vector<16x128xf32>
    %42 = arith.mulf %26, %34 : vector<16x128xf32>
    %43 = arith.addf %41, %42 : vector<16x128xf32>
    %44 = math.tanh %43 : vector<16x128xf32>
    %45 = arith.mulf %40, %44 : vector<16x128xf32>
    %c1_i32 = arith.constant 1 : i32
    %46 = arith.index_cast %c1_i32 : i32 to index
    %c0_23 = arith.constant 0 : index
    %c0_24 = arith.constant 0 : index
    %47 = vector.load %arg9[%46, %c0_23, %c0_24] : memref<8x16x512xf32, #tpu.memory_space<vmem>>, vector<1x16x512xf32>
    %48 = vector.shape_cast %47 : vector<1x16x512xf32> to vector<16x512xf32>
    %49 = arith.truncf %45 : vector<16x128xf32> to vector<16x128xbf16>
    %c0_25 = arith.constant 0 : index
    %c0_26 = arith.constant 0 : index
    %50 = vector.load %arg4[%c0_25, %c0_26] : memref<128x512xbf16, #tpu.memory_space<vmem>>, vector<128x512xbf16>
    %cst_27 = arith.constant dense<0.000000e+00> : vector<16x512xf32>
    %51 = tpu.matmul %49, %50, %cst_27 {dimension_numbers = #tpu.dot_dimension_numbers<[1], [0], [0], [1], [0, 0, 1, 1], [], []>} : vector<16x128xbf16>, vector<128x512xbf16>, vector<16x512xf32> -> vector<16x512xf32>
    %52 = arith.addf %48, %51 : vector<16x512xf32>
    %53 = vector.extract_strided_slice %52 {offsets = [0, 0], sizes = [16, 128], strides = [1, 1]} : vector<16x512xf32> to vector<16x128xf32>
    %54 = arith.negf %53 : vector<16x128xf32>
    %55 = math.exp %54 : vector<16x128xf32>
    %cst_28 = arith.constant 1.000000e+00 : f32
    %56 = vector.broadcast %cst_28 : f32 to vector<16x128xf32>
    %57 = arith.addf %56, %55 : vector<16x128xf32>
    %58 = arith.divf %56, %57 : vector<16x128xf32>
    %59 = vector.extract_strided_slice %52 {offsets = [0, 128], sizes = [16, 128], strides = [1, 1]} : vector<16x512xf32> to vector<16x128xf32>
    %60 = arith.negf %59 : vector<16x128xf32>
    %61 = math.exp %60 : vector<16x128xf32>
    %cst_29 = arith.constant 1.000000e+00 : f32
    %62 = vector.broadcast %cst_29 : f32 to vector<16x128xf32>
    %63 = arith.addf %62, %61 : vector<16x128xf32>
    %64 = arith.divf %62, %63 : vector<16x128xf32>
    %65 = vector.extract_strided_slice %52 {offsets = [0, 256], sizes = [16, 128], strides = [1, 1]} : vector<16x512xf32> to vector<16x128xf32>
    %66 = math.tanh %65 : vector<16x128xf32>
    %67 = vector.extract_strided_slice %52 {offsets = [0, 384], sizes = [16, 128], strides = [1, 1]} : vector<16x512xf32> to vector<16x128xf32>
    %68 = arith.negf %67 : vector<16x128xf32>
    %69 = math.exp %68 : vector<16x128xf32>
    %cst_30 = arith.constant 1.000000e+00 : f32
    %70 = vector.broadcast %cst_30 : f32 to vector<16x128xf32>
    %71 = arith.addf %70, %69 : vector<16x128xf32>
    %72 = arith.divf %70, %71 : vector<16x128xf32>
    %73 = arith.mulf %64, %43 : vector<16x128xf32>
    %74 = arith.mulf %58, %66 : vector<16x128xf32>
    %75 = arith.addf %73, %74 : vector<16x128xf32>
    %76 = math.tanh %75 : vector<16x128xf32>
    %77 = arith.mulf %72, %76 : vector<16x128xf32>
    %c2_i32 = arith.constant 2 : i32
    %78 = arith.index_cast %c2_i32 : i32 to index
    %c0_31 = arith.constant 0 : index
    %c0_32 = arith.constant 0 : index
    %79 = vector.load %arg9[%78, %c0_31, %c0_32] : memref<8x16x512xf32, #tpu.memory_space<vmem>>, vector<1x16x512xf32>
    %80 = vector.shape_cast %79 : vector<1x16x512xf32> to vector<16x512xf32>
    %81 = arith.truncf %77 : vector<16x128xf32> to vector<16x128xbf16>
    %c0_33 = arith.constant 0 : index
    %c0_34 = arith.constant 0 : index
    %82 = vector.load %arg4[%c0_33, %c0_34] : memref<128x512xbf16, #tpu.memory_space<vmem>>, vector<128x512xbf16>
    %cst_35 = arith.constant dense<0.000000e+00> : vector<16x512xf32>
    %83 = tpu.matmul %81, %82, %cst_35 {dimension_numbers = #tpu.dot_dimension_numbers<[1], [0], [0], [1], [0, 0, 1, 1], [], []>} : vector<16x128xbf16>, vector<128x512xbf16>, vector<16x512xf32> -> vector<16x512xf32>
    %84 = arith.addf %80, %83 : vector<16x512xf32>
    %85 = vector.extract_strided_slice %84 {offsets = [0, 0], sizes = [16, 128], strides = [1, 1]} : vector<16x512xf32> to vector<16x128xf32>
    %86 = arith.negf %85 : vector<16x128xf32>
    %87 = math.exp %86 : vector<16x128xf32>
    %cst_36 = arith.constant 1.000000e+00 : f32
    %88 = vector.broadcast %cst_36 : f32 to vector<16x128xf32>
    %89 = arith.addf %88, %87 : vector<16x128xf32>
    %90 = arith.divf %88, %89 : vector<16x128xf32>
    %91 = vector.extract_strided_slice %84 {offsets = [0, 128], sizes = [16, 128], strides = [1, 1]} : vector<16x512xf32> to vector<16x128xf32>
    %92 = arith.negf %91 : vector<16x128xf32>
    %93 = math.exp %92 : vector<16x128xf32>
    %cst_37 = arith.constant 1.000000e+00 : f32
    %94 = vector.broadcast %cst_37 : f32 to vector<16x128xf32>
    %95 = arith.addf %94, %93 : vector<16x128xf32>
    %96 = arith.divf %94, %95 : vector<16x128xf32>
    %97 = vector.extract_strided_slice %84 {offsets = [0, 256], sizes = [16, 128], strides = [1, 1]} : vector<16x512xf32> to vector<16x128xf32>
    %98 = math.tanh %97 : vector<16x128xf32>
    %99 = vector.extract_strided_slice %84 {offsets = [0, 384], sizes = [16, 128], strides = [1, 1]} : vector<16x512xf32> to vector<16x128xf32>
    %100 = arith.negf %99 : vector<16x128xf32>
    %101 = math.exp %100 : vector<16x128xf32>
    %cst_38 = arith.constant 1.000000e+00 : f32
    %102 = vector.broadcast %cst_38 : f32 to vector<16x128xf32>
    %103 = arith.addf %102, %101 : vector<16x128xf32>
    %104 = arith.divf %102, %103 : vector<16x128xf32>
    %105 = arith.mulf %96, %75 : vector<16x128xf32>
    %106 = arith.mulf %90, %98 : vector<16x128xf32>
    %107 = arith.addf %105, %106 : vector<16x128xf32>
    %108 = math.tanh %107 : vector<16x128xf32>
    %109 = arith.mulf %104, %108 : vector<16x128xf32>
    %c3_i32 = arith.constant 3 : i32
    %110 = arith.index_cast %c3_i32 : i32 to index
    %c0_39 = arith.constant 0 : index
    %c0_40 = arith.constant 0 : index
    %111 = vector.load %arg9[%110, %c0_39, %c0_40] : memref<8x16x512xf32, #tpu.memory_space<vmem>>, vector<1x16x512xf32>
    %112 = vector.shape_cast %111 : vector<1x16x512xf32> to vector<16x512xf32>
    %113 = arith.truncf %109 : vector<16x128xf32> to vector<16x128xbf16>
    %c0_41 = arith.constant 0 : index
    %c0_42 = arith.constant 0 : index
    %114 = vector.load %arg4[%c0_41, %c0_42] : memref<128x512xbf16, #tpu.memory_space<vmem>>, vector<128x512xbf16>
    %cst_43 = arith.constant dense<0.000000e+00> : vector<16x512xf32>
    %115 = tpu.matmul %113, %114, %cst_43 {dimension_numbers = #tpu.dot_dimension_numbers<[1], [0], [0], [1], [0, 0, 1, 1], [], []>} : vector<16x128xbf16>, vector<128x512xbf16>, vector<16x512xf32> -> vector<16x512xf32>
    %116 = arith.addf %112, %115 : vector<16x512xf32>
    %117 = vector.extract_strided_slice %116 {offsets = [0, 0], sizes = [16, 128], strides = [1, 1]} : vector<16x512xf32> to vector<16x128xf32>
    %118 = arith.negf %117 : vector<16x128xf32>
    %119 = math.exp %118 : vector<16x128xf32>
    %cst_44 = arith.constant 1.000000e+00 : f32
    %120 = vector.broadcast %cst_44 : f32 to vector<16x128xf32>
    %121 = arith.addf %120, %119 : vector<16x128xf32>
    %122 = arith.divf %120, %121 : vector<16x128xf32>
    %123 = vector.extract_strided_slice %116 {offsets = [0, 128], sizes = [16, 128], strides = [1, 1]} : vector<16x512xf32> to vector<16x128xf32>
    %124 = arith.negf %123 : vector<16x128xf32>
    %125 = math.exp %124 : vector<16x128xf32>
    %cst_45 = arith.constant 1.000000e+00 : f32
    %126 = vector.broadcast %cst_45 : f32 to vector<16x128xf32>
    %127 = arith.addf %126, %125 : vector<16x128xf32>
    %128 = arith.divf %126, %127 : vector<16x128xf32>
    %129 = vector.extract_strided_slice %116 {offsets = [0, 256], sizes = [16, 128], strides = [1, 1]} : vector<16x512xf32> to vector<16x128xf32>
    %130 = math.tanh %129 : vector<16x128xf32>
    %131 = vector.extract_strided_slice %116 {offsets = [0, 384], sizes = [16, 128], strides = [1, 1]} : vector<16x512xf32> to vector<16x128xf32>
    %132 = arith.negf %131 : vector<16x128xf32>
    %133 = math.exp %132 : vector<16x128xf32>
    %cst_46 = arith.constant 1.000000e+00 : f32
    %134 = vector.broadcast %cst_46 : f32 to vector<16x128xf32>
    %135 = arith.addf %134, %133 : vector<16x128xf32>
    %136 = arith.divf %134, %135 : vector<16x128xf32>
    %137 = arith.mulf %128, %107 : vector<16x128xf32>
    %138 = arith.mulf %122, %130 : vector<16x128xf32>
    %139 = arith.addf %137, %138 : vector<16x128xf32>
    %140 = math.tanh %139 : vector<16x128xf32>
    %141 = arith.mulf %136, %140 : vector<16x128xf32>
    %c4_i32 = arith.constant 4 : i32
    %142 = arith.index_cast %c4_i32 : i32 to index
    %c0_47 = arith.constant 0 : index
    %c0_48 = arith.constant 0 : index
    %143 = vector.load %arg9[%142, %c0_47, %c0_48] : memref<8x16x512xf32, #tpu.memory_space<vmem>>, vector<1x16x512xf32>
    %144 = vector.shape_cast %143 : vector<1x16x512xf32> to vector<16x512xf32>
    %145 = arith.truncf %141 : vector<16x128xf32> to vector<16x128xbf16>
    %c0_49 = arith.constant 0 : index
    %c0_50 = arith.constant 0 : index
    %146 = vector.load %arg4[%c0_49, %c0_50] : memref<128x512xbf16, #tpu.memory_space<vmem>>, vector<128x512xbf16>
    %cst_51 = arith.constant dense<0.000000e+00> : vector<16x512xf32>
    %147 = tpu.matmul %145, %146, %cst_51 {dimension_numbers = #tpu.dot_dimension_numbers<[1], [0], [0], [1], [0, 0, 1, 1], [], []>} : vector<16x128xbf16>, vector<128x512xbf16>, vector<16x512xf32> -> vector<16x512xf32>
    %148 = arith.addf %144, %147 : vector<16x512xf32>
    %149 = vector.extract_strided_slice %148 {offsets = [0, 0], sizes = [16, 128], strides = [1, 1]} : vector<16x512xf32> to vector<16x128xf32>
    %150 = arith.negf %149 : vector<16x128xf32>
    %151 = math.exp %150 : vector<16x128xf32>
    %cst_52 = arith.constant 1.000000e+00 : f32
    %152 = vector.broadcast %cst_52 : f32 to vector<16x128xf32>
    %153 = arith.addf %152, %151 : vector<16x128xf32>
    %154 = arith.divf %152, %153 : vector<16x128xf32>
    %155 = vector.extract_strided_slice %148 {offsets = [0, 128], sizes = [16, 128], strides = [1, 1]} : vector<16x512xf32> to vector<16x128xf32>
    %156 = arith.negf %155 : vector<16x128xf32>
    %157 = math.exp %156 : vector<16x128xf32>
    %cst_53 = arith.constant 1.000000e+00 : f32
    %158 = vector.broadcast %cst_53 : f32 to vector<16x128xf32>
    %159 = arith.addf %158, %157 : vector<16x128xf32>
    %160 = arith.divf %158, %159 : vector<16x128xf32>
    %161 = vector.extract_strided_slice %148 {offsets = [0, 256], sizes = [16, 128], strides = [1, 1]} : vector<16x512xf32> to vector<16x128xf32>
    %162 = math.tanh %161 : vector<16x128xf32>
    %163 = vector.extract_strided_slice %148 {offsets = [0, 384], sizes = [16, 128], strides = [1, 1]} : vector<16x512xf32> to vector<16x128xf32>
    %164 = arith.negf %163 : vector<16x128xf32>
    %165 = math.exp %164 : vector<16x128xf32>
    %cst_54 = arith.constant 1.000000e+00 : f32
    %166 = vector.broadcast %cst_54 : f32 to vector<16x128xf32>
    %167 = arith.addf %166, %165 : vector<16x128xf32>
    %168 = arith.divf %166, %167 : vector<16x128xf32>
    %169 = arith.mulf %160, %139 : vector<16x128xf32>
    %170 = arith.mulf %154, %162 : vector<16x128xf32>
    %171 = arith.addf %169, %170 : vector<16x128xf32>
    %172 = math.tanh %171 : vector<16x128xf32>
    %173 = arith.mulf %168, %172 : vector<16x128xf32>
    %c5_i32 = arith.constant 5 : i32
    %174 = arith.index_cast %c5_i32 : i32 to index
    %c0_55 = arith.constant 0 : index
    %c0_56 = arith.constant 0 : index
    %175 = vector.load %arg9[%174, %c0_55, %c0_56] : memref<8x16x512xf32, #tpu.memory_space<vmem>>, vector<1x16x512xf32>
    %176 = vector.shape_cast %175 : vector<1x16x512xf32> to vector<16x512xf32>
    %177 = arith.truncf %173 : vector<16x128xf32> to vector<16x128xbf16>
    %c0_57 = arith.constant 0 : index
    %c0_58 = arith.constant 0 : index
    %178 = vector.load %arg4[%c0_57, %c0_58] : memref<128x512xbf16, #tpu.memory_space<vmem>>, vector<128x512xbf16>
    %cst_59 = arith.constant dense<0.000000e+00> : vector<16x512xf32>
    %179 = tpu.matmul %177, %178, %cst_59 {dimension_numbers = #tpu.dot_dimension_numbers<[1], [0], [0], [1], [0, 0, 1, 1], [], []>} : vector<16x128xbf16>, vector<128x512xbf16>, vector<16x512xf32> -> vector<16x512xf32>
    %180 = arith.addf %176, %179 : vector<16x512xf32>
    %181 = vector.extract_strided_slice %180 {offsets = [0, 0], sizes = [16, 128], strides = [1, 1]} : vector<16x512xf32> to vector<16x128xf32>
    %182 = arith.negf %181 : vector<16x128xf32>
    %183 = math.exp %182 : vector<16x128xf32>
    %cst_60 = arith.constant 1.000000e+00 : f32
    %184 = vector.broadcast %cst_60 : f32 to vector<16x128xf32>
    %185 = arith.addf %184, %183 : vector<16x128xf32>
    %186 = arith.divf %184, %185 : vector<16x128xf32>
    %187 = vector.extract_strided_slice %180 {offsets = [0, 128], sizes = [16, 128], strides = [1, 1]} : vector<16x512xf32> to vector<16x128xf32>
    %188 = arith.negf %187 : vector<16x128xf32>
    %189 = math.exp %188 : vector<16x128xf32>
    %cst_61 = arith.constant 1.000000e+00 : f32
    %190 = vector.broadcast %cst_61 : f32 to vector<16x128xf32>
    %191 = arith.addf %190, %189 : vector<16x128xf32>
    %192 = arith.divf %190, %191 : vector<16x128xf32>
    %193 = vector.extract_strided_slice %180 {offsets = [0, 256], sizes = [16, 128], strides = [1, 1]} : vector<16x512xf32> to vector<16x128xf32>
    %194 = math.tanh %193 : vector<16x128xf32>
    %195 = vector.extract_strided_slice %180 {offsets = [0, 384], sizes = [16, 128], strides = [1, 1]} : vector<16x512xf32> to vector<16x128xf32>
    %196 = arith.negf %195 : vector<16x128xf32>
    %197 = math.exp %196 : vector<16x128xf32>
    %cst_62 = arith.constant 1.000000e+00 : f32
    %198 = vector.broadcast %cst_62 : f32 to vector<16x128xf32>
    %199 = arith.addf %198, %197 : vector<16x128xf32>
    %200 = arith.divf %198, %199 : vector<16x128xf32>
    %201 = arith.mulf %192, %171 : vector<16x128xf32>
    %202 = arith.mulf %186, %194 : vector<16x128xf32>
    %203 = arith.addf %201, %202 : vector<16x128xf32>
    %204 = math.tanh %203 : vector<16x128xf32>
    %205 = arith.mulf %200, %204 : vector<16x128xf32>
    %c6_i32 = arith.constant 6 : i32
    %206 = arith.index_cast %c6_i32 : i32 to index
    %c0_63 = arith.constant 0 : index
    %c0_64 = arith.constant 0 : index
    %207 = vector.load %arg9[%206, %c0_63, %c0_64] : memref<8x16x512xf32, #tpu.memory_space<vmem>>, vector<1x16x512xf32>
    %208 = vector.shape_cast %207 : vector<1x16x512xf32> to vector<16x512xf32>
    %209 = arith.truncf %205 : vector<16x128xf32> to vector<16x128xbf16>
    %c0_65 = arith.constant 0 : index
    %c0_66 = arith.constant 0 : index
    %210 = vector.load %arg4[%c0_65, %c0_66] : memref<128x512xbf16, #tpu.memory_space<vmem>>, vector<128x512xbf16>
    %cst_67 = arith.constant dense<0.000000e+00> : vector<16x512xf32>
    %211 = tpu.matmul %209, %210, %cst_67 {dimension_numbers = #tpu.dot_dimension_numbers<[1], [0], [0], [1], [0, 0, 1, 1], [], []>} : vector<16x128xbf16>, vector<128x512xbf16>, vector<16x512xf32> -> vector<16x512xf32>
    %212 = arith.addf %208, %211 : vector<16x512xf32>
    %213 = vector.extract_strided_slice %212 {offsets = [0, 0], sizes = [16, 128], strides = [1, 1]} : vector<16x512xf32> to vector<16x128xf32>
    %214 = arith.negf %213 : vector<16x128xf32>
    %215 = math.exp %214 : vector<16x128xf32>
    %cst_68 = arith.constant 1.000000e+00 : f32
    %216 = vector.broadcast %cst_68 : f32 to vector<16x128xf32>
    %217 = arith.addf %216, %215 : vector<16x128xf32>
    %218 = arith.divf %216, %217 : vector<16x128xf32>
    %219 = vector.extract_strided_slice %212 {offsets = [0, 128], sizes = [16, 128], strides = [1, 1]} : vector<16x512xf32> to vector<16x128xf32>
    %220 = arith.negf %219 : vector<16x128xf32>
    %221 = math.exp %220 : vector<16x128xf32>
    %cst_69 = arith.constant 1.000000e+00 : f32
    %222 = vector.broadcast %cst_69 : f32 to vector<16x128xf32>
    %223 = arith.addf %222, %221 : vector<16x128xf32>
    %224 = arith.divf %222, %223 : vector<16x128xf32>
    %225 = vector.extract_strided_slice %212 {offsets = [0, 256], sizes = [16, 128], strides = [1, 1]} : vector<16x512xf32> to vector<16x128xf32>
    %226 = math.tanh %225 : vector<16x128xf32>
    %227 = vector.extract_strided_slice %212 {offsets = [0, 384], sizes = [16, 128], strides = [1, 1]} : vector<16x512xf32> to vector<16x128xf32>
    %228 = arith.negf %227 : vector<16x128xf32>
    %229 = math.exp %228 : vector<16x128xf32>
    %cst_70 = arith.constant 1.000000e+00 : f32
    %230 = vector.broadcast %cst_70 : f32 to vector<16x128xf32>
    %231 = arith.addf %230, %229 : vector<16x128xf32>
    %232 = arith.divf %230, %231 : vector<16x128xf32>
    %233 = arith.mulf %224, %203 : vector<16x128xf32>
    %234 = arith.mulf %218, %226 : vector<16x128xf32>
    %235 = arith.addf %233, %234 : vector<16x128xf32>
    %236 = math.tanh %235 : vector<16x128xf32>
    %237 = arith.mulf %232, %236 : vector<16x128xf32>
    %c7_i32 = arith.constant 7 : i32
    %238 = arith.index_cast %c7_i32 : i32 to index
    %c0_71 = arith.constant 0 : index
    %c0_72 = arith.constant 0 : index
    %239 = vector.load %arg9[%238, %c0_71, %c0_72] : memref<8x16x512xf32, #tpu.memory_space<vmem>>, vector<1x16x512xf32>
    %240 = vector.shape_cast %239 : vector<1x16x512xf32> to vector<16x512xf32>
    %241 = arith.truncf %237 : vector<16x128xf32> to vector<16x128xbf16>
    %c0_73 = arith.constant 0 : index
    %c0_74 = arith.constant 0 : index
    %242 = vector.load %arg4[%c0_73, %c0_74] : memref<128x512xbf16, #tpu.memory_space<vmem>>, vector<128x512xbf16>
    %cst_75 = arith.constant dense<0.000000e+00> : vector<16x512xf32>
    %243 = tpu.matmul %241, %242, %cst_75 {dimension_numbers = #tpu.dot_dimension_numbers<[1], [0], [0], [1], [0, 0, 1, 1], [], []>} : vector<16x128xbf16>, vector<128x512xbf16>, vector<16x512xf32> -> vector<16x512xf32>
    %244 = arith.addf %240, %243 : vector<16x512xf32>
    %245 = vector.extract_strided_slice %244 {offsets = [0, 0], sizes = [16, 128], strides = [1, 1]} : vector<16x512xf32> to vector<16x128xf32>
    %246 = arith.negf %245 : vector<16x128xf32>
    %247 = math.exp %246 : vector<16x128xf32>
    %cst_76 = arith.constant 1.000000e+00 : f32
    %248 = vector.broadcast %cst_76 : f32 to vector<16x128xf32>
    %249 = arith.addf %248, %247 : vector<16x128xf32>
    %250 = arith.divf %248, %249 : vector<16x128xf32>
    %251 = vector.extract_strided_slice %244 {offsets = [0, 128], sizes = [16, 128], strides = [1, 1]} : vector<16x512xf32> to vector<16x128xf32>
    %252 = arith.negf %251 : vector<16x128xf32>
    %253 = math.exp %252 : vector<16x128xf32>
    %cst_77 = arith.constant 1.000000e+00 : f32
    %254 = vector.broadcast %cst_77 : f32 to vector<16x128xf32>
    %255 = arith.addf %254, %253 : vector<16x128xf32>
    %256 = arith.divf %254, %255 : vector<16x128xf32>
    %257 = vector.extract_strided_slice %244 {offsets = [0, 256], sizes = [16, 128], strides = [1, 1]} : vector<16x512xf32> to vector<16x128xf32>
    %258 = math.tanh %257 : vector<16x128xf32>
    %259 = vector.extract_strided_slice %244 {offsets = [0, 384], sizes = [16, 128], strides = [1, 1]} : vector<16x512xf32> to vector<16x128xf32>
    %260 = arith.negf %259 : vector<16x128xf32>
    %261 = math.exp %260 : vector<16x128xf32>
    %cst_78 = arith.constant 1.000000e+00 : f32
    %262 = vector.broadcast %cst_78 : f32 to vector<16x128xf32>
    %263 = arith.addf %262, %261 : vector<16x128xf32>
    %264 = arith.divf %262, %263 : vector<16x128xf32>
    %265 = arith.mulf %256, %235 : vector<16x128xf32>
    %266 = arith.mulf %250, %258 : vector<16x128xf32>
    %267 = arith.addf %265, %266 : vector<16x128xf32>
    %268 = math.tanh %267 : vector<16x128xf32>
    %269 = arith.mulf %264, %268 : vector<16x128xf32>
    %c8_i32 = arith.constant 8 : i32
    %c0_79 = arith.constant 0 : index
    %c0_80 = arith.constant 0 : index
    %270 = vector.load %arg10[%c0_79, %c0_80] : memref<16x128xf32, #tpu.memory_space<vmem>>, vector<16x128xf32>
    tpu.vector_store %arg10[%c0_79, %c0_80], %269 {strides = array<i32>} : memref<16x128xf32, #tpu.memory_space<vmem>>, vector<16x128xf32>,
    %c0_81 = arith.constant 0 : index
    %c0_82 = arith.constant 0 : index
    %271 = vector.load %arg11[%c0_81, %c0_82] : memref<16x128xf32, #tpu.memory_space<vmem>>, vector<16x128xf32>
    tpu.vector_store %arg11[%c0_81, %c0_82], %267 {strides = array<i32>} : memref<16x128xf32, #tpu.memory_space<vmem>>, vector<16x128xf32>,
    %c0_i32_83 = arith.constant 0 : i32
    %272 = arith.cmpi eq, %arg1, %c0_i32_83 : i32
    %273 = arith.extui %272 : i1 to i32
    %c0_i32_84 = arith.constant 0 : i32
    %274 = arith.cmpi ne, %273, %c0_i32_84 : i32
    scf.if %274 {
      %275 = arith.truncf %269 : vector<16x128xf32> to vector<16x128xbf16>
      %c0_85 = arith.constant 0 : index
      %c0_86 = arith.constant 0 : index
      %276 = vector.load %arg6[%c0_85, %c0_86] : memref<128x128xbf16, #tpu.memory_space<vmem>>, vector<128x128xbf16>
      %cst_87 = arith.constant dense<0.000000e+00> : vector<16x128xf32>
      %277 = tpu.matmul %275, %276, %cst_87 {dimension_numbers = #tpu.dot_dimension_numbers<[1], [0], [0], [1], [0, 0, 1, 1], [], []>} : vector<16x128xbf16>, vector<128x128xbf16>, vector<16x128xf32> -> vector<16x128xf32>
      %c0_88 = arith.constant 0 : index
      %c0_89 = arith.constant 0 : index
      %278 = vector.load %arg7[%c0_88, %c0_89] : memref<1x128xf32, #tpu.memory_space<vmem>>, vector<1x128xf32>
      %279 = vector.broadcast %278 : vector<1x128xf32> to vector<16x128xf32>
      %280 = arith.addf %277, %279 : vector<16x128xf32>
      %c0_90 = arith.constant 0 : index
      %c0_91 = arith.constant 0 : index
      %281 = vector.load %arg8[%c0_90, %c0_91] : memref<16x128xf32, #tpu.memory_space<vmem>>, vector<16x128xf32>
      tpu.vector_store %arg8[%c0_90, %c0_91], %280 {strides = array<i32>} : memref<16x128xf32, #tpu.memory_space<vmem>>, vector<16x128xf32>,
    } else {
    }
    return
  }
  func.func @transform_0(%arg0: i32, %arg1: i32) -> (i32, i32, i32) {
    %c0_i32 = arith.constant 0 : i32
    %c0_i32_0 = arith.constant 0 : i32
    return %arg1, %arg0, %c0_i32 : i32, i32, i32
  }
  func.func @transform_1(%arg0: i32, %arg1: i32) -> (i32, i32) {
    %c0_i32 = arith.constant 0 : i32
    %c0_i32_0 = arith.constant 0 : i32
    %c0_i32_1 = arith.constant 0 : i32
    return %c0_i32, %c0_i32_0 : i32, i32
  }
  func.func @transform_2(%arg0: i32, %arg1: i32) -> (i32, i32) {
    %c0_i32 = arith.constant 0 : i32
    %c0_i32_0 = arith.constant 0 : i32
    %c0_i32_1 = arith.constant 0 : i32
    return %c0_i32, %c0_i32_0 : i32, i32
  }
  func.func @transform_3(%arg0: i32, %arg1: i32) -> (i32, i32) {
    %c0_i32 = arith.constant 0 : i32
    %c0_i32_0 = arith.constant 0 : i32
    %c0_i32_1 = arith.constant 0 : i32
    return %c0_i32, %c0_i32_0 : i32, i32
  }
  func.func @transform_4(%arg0: i32, %arg1: i32) -> (i32, i32) {
    %c0_i32 = arith.constant 0 : i32
    %c0_i32_0 = arith.constant 0 : i32
    %c0_i32_1 = arith.constant 0 : i32
    return %c0_i32, %c0_i32_0 : i32, i32
  }
  func.func @transform_5(%arg0: i32, %arg1: i32) -> (i32, i32) {
    %c0_i32 = arith.constant 0 : i32
    %c0_i32_0 = arith.constant 0 : i32
    %c0_i32_1 = arith.constant 0 : i32
    return %c0_i32, %c0_i32_0 : i32, i32
  }
  func.func @transform_6(%arg0: i32, %arg1: i32) -> (i32, i32) {
    %c0_i32 = arith.constant 0 : i32
    %c0_i32_0 = arith.constant 0 : i32
    return %arg0, %c0_i32 : i32, i32
  }
}

</mosaic_0001>

<llo_original>
// kernel: tpu_custom_call.1
$region0: #{tpu_custom_call.1}
  #allocation0 [shape = 'u32[]', space=smem, size = 0x4, offset = 0x4, fixed_abs, tag = 'smem constant byte address 0x4 - core index']
  #allocation1 [shape = 'u32[144,128]{1,0:T(1,128)}', space=vmem, size = 0x12000, scoped, tag = 'internal scratch']
  #allocation2 [shape = 'f32[8,16,512]{2,1,0:T(8,128)}', space=vmem, size = 0x40000, scoped, tag = 'scratch operand']
  #allocation3 [shape = 'f32[16,128]{1,0:T(8,128)}', space=vmem, size = 0x2000, scoped, tag = 'scratch operand']
  #allocation4 [shape = 'f32[16,128]{1,0:T(8,128)}', space=vmem, size = 0x2000, scoped, tag = 'scratch operand']
  %s0 = inlined_call_operand.hbm [shape: bf16[8,16,16], index: 0, kind: input, shape index: {}]
  %s1 = inlined_call_operand.hbm [shape: bf16[16,512], index: 1, kind: input, shape index: {}]
  %s2 = inlined_call_operand.hbm [shape: bf16[128,512], index: 2, kind: input, shape index: {}]
  %s3 = inlined_call_operand.vmem [shape: f32[1,512], index: 3, kind: input, shape index: {}]
  %s4 = inlined_call_operand.hbm [shape: bf16[128,128], index: 4, kind: input, shape index: {}]
  %s5 = inlined_call_operand.vmem [shape: f32[1,128], index: 5, kind: input, shape index: {}]
  %s6 = inlined_call_operand.hbm [shape: f32[16,128], index: 6, kind: output, shape index: {}]
  %s7 = sld [smem:[#allocation0]]
  $region58: #{tpu_custom_call.1} parent=0
    _
  %s9 = ssub.s32 1, %s7
  %s10 = scalar_select 0, %s9, %s7
  $region1: #{tpu_custom_call.1} parent=0
    #allocation5 [shape = 'u8[32768]{0}', space=vmem, size = 0x8000, scoped, tag = 'input window, operand 0, single buffered']
    #allocation6 [shape = 's32[1]{0}', space=sflag, size = 0x4, scoped, tag = 'scoped memory for tpu_custom_call.1']
    #allocation7 [shape = 's32[1]{0}', space=sflag, size = 0x4, scoped, tag = 'scoped memory for tpu_custom_call.1']
    #allocation8 [shape = 'u8[16384]{0}', space=vmem, size = 0x4000, scoped, tag = 'input window, operand 1, single buffered']
    #allocation9 [shape = 's32[1]{0}', space=sflag, size = 0x4, scoped, tag = 'scoped memory for tpu_custom_call.1']
    #allocation10 [shape = 'u8[131072]{0}', space=vmem, size = 0x20000, scoped, tag = 'input window, operand 2, single buffered']
    #allocation11 [shape = 'u8[32768]{0}', space=vmem, size = 0x8000, scoped, tag = 'input window, operand 4, single buffered']
    #allocation12 [shape = 's32[1]{0}', space=sflag, size = 0x4, scoped, tag = 'scoped memory for tpu_custom_call.1']
    #allocation13 [shape = 'u8[8192]{0}', space=vmem, size = 0x2000, scoped, tag = 'output window, operand 0, single buffered']
    %11 = vsyncpa [#allocation6], 0
    %12 = vsyncpa [#allocation9], 0
    %13 = vsyncpa [#allocation12], 0
    %14 = vsyncpa [#allocation7], 0
    // Predicated region
    $region2: #{tpu_custom_call.1} parent=1 // pred_check
      _
    $region3: #{tpu_custom_call.1} parent=1 // pred_check_branch
      %16 = sbr.rel (0) target = $region5
    $region4: #{tpu_custom_call.1} parent=1 // pred_region
      %s18 = ssub.s32 1024, 1024
      %19 = vsyncadd [#allocation6], %s18
      %s20 = sshll.u32 [#allocation5], 4
      %s21 = int_to_ptr.vmem [resolvable:$true] %s20
      %26 = dma.hbm_to_vmem [thread:$0]  %s0, 1024, %s21, [#allocation6], 64, 64, 4
    $region5: #{tpu_custom_call.1} parent=1 // pred_fallthru
      _
    // Predicated region
    $region6: #{tpu_custom_call.1} parent=1 // pred_check
      _
    $region7: #{tpu_custom_call.1} parent=1 // pred_check_branch
      %28 = sbr.rel (0) target = $region9
    $region8: #{tpu_custom_call.1} parent=1 // pred_region
      %s30 = ssub.s32 512, 512
      %31 = vsyncadd [#allocation9], %s30
      %s32 = sshll.u32 [#allocation8], 4
      %s33 = int_to_ptr.vmem [resolvable:$true] %s32
      %38 = dma.hbm_to_vmem [thread:$0]  %s1, 512, %s33, [#allocation9], 256, 256, 16
    $region9: #{tpu_custom_call.1} parent=1 // pred_fallthru
      _
    // Predicated region
    $region10: #{tpu_custom_call.1} parent=1 // pred_check
      _
    $region11: #{tpu_custom_call.1} parent=1 // pred_check_branch
      %40 = sbr.rel (0) target = $region13
    $region12: #{tpu_custom_call.1} parent=1 // pred_region
      %s42 = ssub.s32 4096, 4096
      %43 = vsyncadd [#allocation9], %s42
      %s44 = sshll.u32 [#allocation10], 4
      %s45 = int_to_ptr.vmem [resolvable:$true] %s44
      %50 = dma.hbm_to_vmem [thread:$0]  %s2, 4096, %s45, [#allocation9], 256, 256, 16
    $region13: #{tpu_custom_call.1} parent=1 // pred_fallthru
      _
    // Predicated region
    $region14: #{tpu_custom_call.1} parent=1 // pred_check
      _
    $region15: #{tpu_custom_call.1} parent=1 // pred_check_branch
      %52 = sbr.rel (0) target = $region17
    $region16: #{tpu_custom_call.1} parent=1 // pred_region
      _
    $region17: #{tpu_custom_call.1} parent=1 // pred_fallthru
      _
    // Predicated region
    $region18: #{tpu_custom_call.1} parent=1 // pred_check
      _
    $region19: #{tpu_custom_call.1} parent=1 // pred_check_branch
      %54 = sbr.rel (0) target = $region21
    $region20: #{tpu_custom_call.1} parent=1 // pred_region
      %s56 = ssub.s32 1024, 1024
      %57 = vsyncadd [#allocation12], %s56
      %s58 = sshll.u32 [#allocation11], 4
      %s59 = int_to_ptr.vmem [resolvable:$true] %s58
      %64 = dma.hbm_to_vmem [thread:$0]  %s4, 1024, %s59, [#allocation12], 64, 64, 4
    $region21: #{tpu_custom_call.1} parent=1 // pred_fallthru
      _
    // Predicated region
    $region22: #{tpu_custom_call.1} parent=1 // pred_check
      _
    $region23: #{tpu_custom_call.1} parent=1 // pred_check_branch
      %66 = sbr.rel (0) target = $region25
    $region24: #{tpu_custom_call.1} parent=1 // pred_region
      _
    $region25: #{tpu_custom_call.1} parent=1 // pred_fallthru
      _
    // Predicated region
    $region26: #{tpu_custom_call.1} parent=1 // pred_check
      _
    $region27: #{tpu_custom_call.1} parent=1 // pred_check_branch
      %68 = sbr.rel (0) target = $region29
    $region28: #{tpu_custom_call.1} parent=1 // pred_region
      %69 = dma.done [#allocation6], 1024
    $region29: #{tpu_custom_call.1} parent=1 // pred_fallthru
      _
    // Predicated region
    $region30: #{tpu_custom_call.1} parent=1 // pred_check
      _
    $region31: #{tpu_custom_call.1} parent=1 // pred_check_branch
      %71 = sbr.rel (0) target = $region33
    $region32: #{tpu_custom_call.1} parent=1 // pred_region
      %72 = dma.done [#allocation9], 512
    $region33: #{tpu_custom_call.1} parent=1 // pred_fallthru
      _
    // Predicated region
    $region34: #{tpu_custom_call.1} parent=1 // pred_check
      _
    $region35: #{tpu_custom_call.1} parent=1 // pred_check_branch
      %74 = sbr.rel (0) target = $region37
    $region36: #{tpu_custom_call.1} parent=1 // pred_region
      %75 = dma.done [#allocation9], 4096
    $region37: #{tpu_custom_call.1} parent=1 // pred_fallthru
      _
    // Predicated region
    $region38: #{tpu_custom_call.1} parent=1 // pred_check
      _
    $region39: #{tpu_custom_call.1} parent=1 // pred_check_branch
      %77 = sbr.rel (0) target = $region41
    $region40: #{tpu_custom_call.1} parent=1 // pred_region
      %78 = dma.done [#allocation12], 1024
    $region41: #{tpu_custom_call.1} parent=1 // pred_fallthru
      _
    %p80 = scmp.eq.s32.totalorder 0, 0
    // Predicated region
    $region42: #{tpu_custom_call.1} parent=1 // pred_check
      %p81 = pneg %p80
    $region43: #{tpu_custom_call.1} parent=1 // pred_check_branch
      %83 = sbr.rel (%p81) target = $region45
    $region44: #{tpu_custom_call.1} parent=1 // pred_region
      %84 = vst [vmem:[#allocation3] sm:$0xff] 0.0
      %85 = vst [vmem:[#allocation3 + $0x8] sm:$0xff] 0.0
      %86 = vst [vmem:[#allocation4] sm:$0xff] 0.0
      %87 = vst [vmem:[#allocation4 + $0x8] sm:$0xff] 0.0
    $region45: #{tpu_custom_call.1} parent=1 // pred_fallthru
      _
    %v88 = vld [vmem:[#allocation5] sm:$0xf]
    %v89 = vld [vmem:[#allocation5 + $0x4] sm:$0xf]
    %v90 = vld [vmem:[#allocation5 + $0x8] sm:$0xf]
    %v91 = vld [vmem:[#allocation5 + $0xc] sm:$0xf]
    %v92 = vld [vmem:[#allocation5 + $0x10] sm:$0xf]
    %v93 = vld [vmem:[#allocation5 + $0x14] sm:$0xf]
    %v94 = vld [vmem:[#allocation5 + $0x18] sm:$0xf]
    %v95 = vld [vmem:[#allocation5 + $0x1c] sm:$0xf]
    %v96 = vld [vmem:[#allocation5 + $0x20] sm:$0xf]
    %v97 = vld [vmem:[#allocation5 + $0x24] sm:$0xf]
    %v98 = vld [vmem:[#allocation5 + $0x28] sm:$0xf]
    %v99 = vld [vmem:[#allocation5 + $0x2c] sm:$0xf]
    %v100 = vld [vmem:[#allocation5 + $0x30] sm:$0xf]
    %v101 = vld [vmem:[#allocation5 + $0x34] sm:$0xf]
    %v102 = vld [vmem:[#allocation5 + $0x38] sm:$0xf]
    %v103 = vld [vmem:[#allocation5 + $0x3c] sm:$0xf]
    %v104 = vld [vmem:[#allocation8] sm:$0xff]
    %v105 = vld [vmem:[#allocation8 + $0x8] sm:$0xff]
    %v106 = vld [vmem:[#allocation8 + $0x10] sm:$0xff]
    %v107 = vld [vmem:[#allocation8 + $0x18] sm:$0xff]
    %v108 = vld [vmem:[%s3] sm:$0xf]
    %v110 = vlaneseq
    %v111 = vshrl.u32 %v110, 7
    %v112 = vsub.s32 0, %v111
    %v113 = vrot.slane %v108, %v112
    %v114 = vlaneseq
    %v115 = vshrl.u32 %v114, 7
    %v116 = vsub.s32 1, %v115
    %v117 = vrot.slane %v108, %v116
    %v118 = vlaneseq
    %v119 = vshrl.u32 %v118, 7
    %v120 = vsub.s32 2, %v119
    %v121 = vrot.slane %v108, %v120
    %v122 = vlaneseq
    %v123 = vshrl.u32 %v122, 7
    %v124 = vsub.s32 3, %v123
    %v125 = vrot.slane %v108, %v124
    %v146 = vunpack.c.l.b16 %v88
    %v147 = vunpack.c.l.b16 %v89
    %v148 = vunpack.c.l.b16 %v90
    %v149 = vunpack.c.l.b16 %v91
    %v150 = vunpack.c.l.b16 %v92
    %v151 = vunpack.c.l.b16 %v93
    %v152 = vunpack.c.l.b16 %v94
    %v153 = vunpack.c.l.b16 %v95
    %v154 = vunpack.c.l.b16 %v96
    %v155 = vunpack.c.l.b16 %v97
    %v156 = vunpack.c.l.b16 %v98
    %v157 = vunpack.c.l.b16 %v99
    %v158 = vunpack.c.l.b16 %v100
    %v159 = vunpack.c.l.b16 %v101
    %v160 = vunpack.c.l.b16 %v102
    %v161 = vunpack.c.l.b16 %v103
    %v162 = vpack.c.b16 %v147, %v146
    %v163 = vpack.c.b16 %v149, %v148
    %v164 = vpack.c.b16 %v151, %v150
    %v165 = vpack.c.b16 %v153, %v152
    %v166 = vpack.c.b16 %v155, %v154
    %v167 = vpack.c.b16 %v157, %v156
    %v168 = vpack.c.b16 %v159, %v158
    %v169 = vpack.c.b16 %v161, %v160
    %v174 = vunpack.c.l.b16 %v104
    %v175 = vunpack.c.h.b16 %v104
    %v176 = vunpack.c.l.b16 %v105
    %v177 = vunpack.c.h.b16 %v105
    %v178 = vunpack.c.l.b16 %v106
    %v179 = vunpack.c.h.b16 %v106
    %v180 = vunpack.c.l.b16 %v107
    %v181 = vunpack.c.h.b16 %v107
    %v182 = vpack.c.b16 %v178, %v174
    %v183 = vpack.c.b16 %v179, %v175
    %v184 = vpack.c.b16 %v180, %v176
    %v185 = vpack.c.b16 %v181, %v177
    %vm190 = vcmask 130048
    %v192 = vsel %vm190, %v162, 0
    %v195 = vsel %vm190, %v163, 0
    %v198 = vsel %vm190, %v164, 0
    %v201 = vsel %vm190, %v165, 0
    %v204 = vsel %vm190, %v166, 0
    %v207 = vsel %vm190, %v167, 0
    %v210 = vsel %vm190, %v168, 0
    %v213 = vsel %vm190, %v169, 0
    %215 = vmatprep.subr.bf16.mxu0 %v183
    %216 = vmatpush1.bf16.msra.mxu0 %v182
    %217 = vmatprep.subr.bf16.mxu0 0
    %218 = vmatpush1.bf16.msra.mxu0 0
    %219 = vmatprep.subr.bf16.mxu0 0
    %220 = vmatpush1.bf16.msra.mxu0 0
    %221 = vmatprep.subr.bf16.mxu0 0
    %222 = vmatpush1.bf16.msra.mxu0 0
    %223 = vmatprep.subr.bf16.mxu0 0
    %224 = vmatpush1.bf16.msra.mxu0 0
    %225 = vmatprep.subr.bf16.mxu0 0
    %226 = vmatpush1.bf16.msra.mxu0 0
    %227 = vmatprep.subr.bf16.mxu0 0
    %228 = vmatpush1.bf16.msra.mxu0 0
    %229 = vmatprep.subr.bf16.mxu0 0
    %230 = vmatpush1.bf16.msra.mxu0 0
    %231 = vmatprep.subr.bf16.mxu0 0
    %232 = vmatpush1.bf16.msra.mxu0 0
    %233 = vmatprep.subr.bf16.mxu0 0
    %234 = vmatpush1.bf16.msra.mxu0 0
    %235 = vmatprep.subr.bf16.mxu0 0
    %236 = vmatpush1.bf16.msra.mxu0 0
    %237 = vmatprep.subr.bf16.mxu0 0
    %238 = vmatpush1.bf16.msra.mxu0 0
    %239 = vmatprep.subr.bf16.mxu0 0
    %240 = vmatpush1.bf16.msra.mxu0 0
    %241 = vmatprep.subr.bf16.mxu0 0
    %242 = vmatpush1.bf16.msra.mxu0 0
    %243 = vmatprep.subr.bf16.mxu0 0
    %244 = vmatpush1.bf16.msra.mxu0 0
    %245 = vmatprep.subr.bf16.mxu0 0
    %246 = vmatpush1.bf16.msra.mxu0 0
    %247 = vmatprep.mubr.bf16.mxu0 0
    %248 = vmatmul.mubr.bf16.gmra.mrb[0].mxu0 %v192
    %v249 = vpop.f32.mrb[0].mxu0
    %v250 = vadd.f32 %v113, %v249
    %v251 = vpop.f32.mrb[0].mxu0
    %v252 = vadd.f32 %v117, %v251
    %v253 = vpop.f32.mrb[0].mxu0
    %v254 = vadd.f32 %v113, %v253
    %v255 = vpop.f32.mrb[0].mxu0
    %v256 = vadd.f32 %v117, %v255
    %257 = vmatprep.mubr.bf16.mxu0 0
    %258 = vmatmul.mubr.bf16.gmra.mrb[0].mxu0 %v195
    %v259 = vpop.f32.mrb[0].mxu0
    %v260 = vadd.f32 %v113, %v259
    %v261 = vpop.f32.mrb[0].mxu0
    %v262 = vadd.f32 %v117, %v261
    %v263 = vpop.f32.mrb[0].mxu0
    %v264 = vadd.f32 %v113, %v263
    %v265 = vpop.f32.mrb[0].mxu0
    %v266 = vadd.f32 %v117, %v265
    %267 = vmatprep.mubr.bf16.mxu0 0
    %268 = vmatmul.mubr.bf16.gmra.mrb[0].mxu0 %v198
    %v269 = vpop.f32.mrb[0].mxu0
    %v270 = vadd.f32 %v113, %v269
    %v271 = vpop.f32.mrb[0].mxu0
    %v272 = vadd.f32 %v117, %v271
    %v273 = vpop.f32.mrb[0].mxu0
    %v274 = vadd.f32 %v113, %v273
    %v275 = vpop.f32.mrb[0].mxu0
    %v276 = vadd.f32 %v117, %v275
    %277 = vmatprep.mubr.bf16.mxu0 0
    %278 = vmatmul.mubr.bf16.gmra.mrb[0].mxu0 %v201
    %v279 = vpop.f32.mrb[0].mxu0
    %v280 = vadd.f32 %v113, %v279
    %v281 = vpop.f32.mrb[0].mxu0
    %v282 = vadd.f32 %v117, %v281
    %v283 = vpop.f32.mrb[0].mxu0
    %v284 = vadd.f32 %v113, %v283
    %v285 = vpop.f32.mrb[0].mxu0
    %v286 = vadd.f32 %v117, %v285
    %287 = vmatprep.mubr.bf16.mxu0 0
    %288 = vmatmul.mubr.bf16.gmra.mrb[0].mxu0 %v204
    %v289 = vpop.f32.mrb[0].mxu0
    %v290 = vadd.f32 %v113, %v289
    %v291 = vpop.f32.mrb[0].mxu0
    %v292 = vadd.f32 %v117, %v291
    %v293 = vpop.f32.mrb[0].mxu0
    %v294 = vadd.f32 %v113, %v293
    %v295 = vpop.f32.mrb[0].mxu0
    %v296 = vadd.f32 %v117, %v295
    %297 = vmatprep.mubr.bf16.mxu0 0
    %298 = vmatmul.mubr.bf16.gmra.mrb[0].mxu0 %v207
    %v299 = vpop.f32.mrb[0].mxu0
    %v300 = vadd.f32 %v113, %v299
    %v301 = vpop.f32.mrb[0].mxu0
    %v302 = vadd.f32 %v117, %v301
    %v303 = vpop.f32.mrb[0].mxu0
    %v304 = vadd.f32 %v113, %v303
    %v305 = vpop.f32.mrb[0].mxu0
    %v306 = vadd.f32 %v117, %v305
    %307 = vmatprep.mubr.bf16.mxu0 0
    %308 = vmatmul.mubr.bf16.gmra.mrb[0].mxu0 %v210
    %v309 = vpop.f32.mrb[0].mxu0
    %v310 = vadd.f32 %v113, %v309
    %v311 = vpop.f32.mrb[0].mxu0
    %v312 = vadd.f32 %v117, %v311
    %v313 = vpop.f32.mrb[0].mxu0
    %v314 = vadd.f32 %v113, %v313
    %v315 = vpop.f32.mrb[0].mxu0
    %v316 = vadd.f32 %v117, %v315
    %317 = vmatprep.mubr.bf16.mxu0 0
    %318 = vmatmul.mubr.bf16.gmra.mrb[0].mxu0 %v213
    %v319 = vpop.f32.mrb[0].mxu0
    %v320 = vadd.f32 %v113, %v319
    %v321 = vpop.f32.mrb[0].mxu0
    %v322 = vadd.f32 %v117, %v321
    %v323 = vpop.f32.mrb[0].mxu0
    %v324 = vadd.f32 %v113, %v323
    %v325 = vpop.f32.mrb[0].mxu0
    %v326 = vadd.f32 %v117, %v325
    %327 = vdwg.mxu0
    %328 = vmatprep.subr.bf16.mxu0 %v185
    %329 = vmatpush1.bf16.msra.mxu0 %v184
    %330 = vmatprep.subr.bf16.mxu0 0
    %331 = vmatpush1.bf16.msra.mxu0 0
    %332 = vmatprep.subr.bf16.mxu0 0
    %333 = vmatpush1.bf16.msra.mxu0 0
    %334 = vmatprep.subr.bf16.mxu0 0
    %335 = vmatpush1.bf16.msra.mxu0 0
    %336 = vmatprep.subr.bf16.mxu0 0
    %337 = vmatpush1.bf16.msra.mxu0 0
    %338 = vmatprep.subr.bf16.mxu0 0
    %339 = vmatpush1.bf16.msra.mxu0 0
    %340 = vmatprep.subr.bf16.mxu0 0
    %341 = vmatpush1.bf16.msra.mxu0 0
    %342 = vmatprep.subr.bf16.mxu0 0
    %343 = vmatpush1.bf16.msra.mxu0 0
    %344 = vmatprep.subr.bf16.mxu0 0
    %345 = vmatpush1.bf16.msra.mxu0 0
    %346 = vmatprep.subr.bf16.mxu0 0
    %347 = vmatpush1.bf16.msra.mxu0 0
    %348 = vmatprep.subr.bf16.mxu0 0
    %349 = vmatpush1.bf16.msra.mxu0 0
    %350 = vmatprep.subr.bf16.mxu0 0
    %351 = vmatpush1.bf16.msra.mxu0 0
    %352 = vmatprep.subr.bf16.mxu0 0
    %353 = vmatpush1.bf16.msra.mxu0 0
    %354 = vmatprep.subr.bf16.mxu0 0
    %355 = vmatpush1.bf16.msra.mxu0 0
    %356 = vmatprep.subr.bf16.mxu0 0
    %357 = vmatpush1.bf16.msra.mxu0 0
    %358 = vmatprep.subr.bf16.mxu0 0
    %359 = vmatpush1.bf16.msra.mxu0 0
    %360 = vmatprep.mubr.bf16.mxu0 0
    %361 = vmatmul.mubr.bf16.gmra.mrb[0].mxu0 %v192
    %v362 = vpop.f32.mrb[0].mxu0
    %v363 = vadd.f32 %v121, %v362
    %v364 = vpop.f32.mrb[0].mxu0
    %v365 = vadd.f32 %v125, %v364
    %v366 = vpop.f32.mrb[0].mxu0
    %v367 = vadd.f32 %v121, %v366
    %v368 = vpop.f32.mrb[0].mxu0
    %v369 = vadd.f32 %v125, %v368
    %370 = vmatprep.mubr.bf16.mxu0 0
    %371 = vmatmul.mubr.bf16.gmra.mrb[0].mxu0 %v195
    %v372 = vpop.f32.mrb[0].mxu0
    %v373 = vadd.f32 %v121, %v372
    %v374 = vpop.f32.mrb[0].mxu0
    %v375 = vadd.f32 %v125, %v374
    %v376 = vpop.f32.mrb[0].mxu0
    %v377 = vadd.f32 %v121, %v376
    %v378 = vpop.f32.mrb[0].mxu0
    %v379 = vadd.f32 %v125, %v378
    %380 = vmatprep.mubr.bf16.mxu0 0
    %381 = vmatmul.mubr.bf16.gmra.mrb[0].mxu0 %v198
    %v382 = vpop.f32.mrb[0].mxu0
    %v383 = vadd.f32 %v121, %v382
    %v384 = vpop.f32.mrb[0].mxu0
    %v385 = vadd.f32 %v125, %v384
    %v386 = vpop.f32.mrb[0].mxu0
    %v387 = vadd.f32 %v121, %v386
    %v388 = vpop.f32.mrb[0].mxu0
    %v389 = vadd.f32 %v125, %v388
    %390 = vmatprep.mubr.bf16.mxu0 0
    %391 = vmatmul.mubr.bf16.gmra.mrb[0].mxu0 %v201
    %v392 = vpop.f32.mrb[0].mxu0
    %v393 = vadd.f32 %v121, %v392
    %v394 = vpop.f32.mrb[0].mxu0
    %v395 = vadd.f32 %v125, %v394
    %v396 = vpop.f32.mrb[0].mxu0
    %v397 = vadd.f32 %v121, %v396
    %v398 = vpop.f32.mrb[0].mxu0
    %v399 = vadd.f32 %v125, %v398
    %400 = vmatprep.mubr.bf16.mxu0 0
    %401 = vmatmul.mubr.bf16.gmra.mrb[0].mxu0 %v204
    %v402 = vpop.f32.mrb[0].mxu0
    %v403 = vadd.f32 %v121, %v402
    %v404 = vpop.f32.mrb[0].mxu0
    %v405 = vadd.f32 %v125, %v404
    %v406 = vpop.f32.mrb[0].mxu0
    %v407 = vadd.f32 %v121, %v406
    %v408 = vpop.f32.mrb[0].mxu0
    %v409 = vadd.f32 %v125, %v408
    %410 = vmatprep.mubr.bf16.mxu0 0
    %411 = vmatmul.mubr.bf16.gmra.mrb[0].mxu0 %v207
    %v412 = vpop.f32.mrb[0].mxu0
    %v413 = vadd.f32 %v121, %v412
    %v414 = vpop.f32.mrb[0].mxu0
    %v415 = vadd.f32 %v125, %v414
    %v416 = vpop.f32.mrb[0].mxu0
    %v417 = vadd.f32 %v121, %v416
    %v418 = vpop.f32.mrb[0].mxu0
    %v419 = vadd.f32 %v125, %v418
    %420 = vmatprep.mubr.bf16.mxu0 0
    %421 = vmatmul.mubr.bf16.gmra.mrb[0].mxu0 %v210
    %v422 = vpop.f32.mrb[0].mxu0
    %v423 = vadd.f32 %v121, %v422
    %v424 = vpop.f32.mrb[0].mxu0
    %v425 = vadd.f32 %v125, %v424
    %v426 = vpop.f32.mrb[0].mxu0
    %v427 = vadd.f32 %v121, %v426
    %v428 = vpop.f32.mrb[0].mxu0
    %v429 = vadd.f32 %v125, %v428
    %430 = vmatprep.mubr.bf16.mxu0 0
    %431 = vmatmul.mubr.bf16.gmra.mrb[0].mxu0 %v213
    %v432 = vpop.f32.mrb[0].mxu0
    %v433 = vadd.f32 %v121, %v432
    %v434 = vpop.f32.mrb[0].mxu0
    %v435 = vadd.f32 %v125, %v434
    %v436 = vpop.f32.mrb[0].mxu0
    %v437 = vadd.f32 %v121, %v436
    %v438 = vpop.f32.mrb[0].mxu0
    %v439 = vadd.f32 %v125, %v438
    %440 = vdwg.mxu0
    %441 = vst [vmem:[#allocation2] sm:$0xff] %v250
    %442 = vst [vmem:[#allocation2 + $0x8] sm:$0xff] %v252
    %443 = vst [vmem:[#allocation2 + $0x10] sm:$0xff] %v363
    %444 = vst [vmem:[#allocation2 + $0x18] sm:$0xff] %v365
    %445 = vst [vmem:[#allocation2 + $0x20] sm:$0xff] %v254
    %446 = vst [vmem:[#allocation2 + $0x28] sm:$0xff] %v256
    %447 = vst [vmem:[#allocation2 + $0x30] sm:$0xff] %v367
    %448 = vst [vmem:[#allocation2 + $0x38] sm:$0xff] %v369
    %449 = vst [vmem:[#allocation2 + $0x40] sm:$0xff] %v260
    %450 = vst [vmem:[#allocation2 + $0x48] sm:$0xff] %v262
    %451 = vst [vmem:[#allocation2 + $0x50] sm:$0xff] %v373
    %452 = vst [vmem:[#allocation2 + $0x58] sm:$0xff] %v375
    %453 = vst [vmem:[#allocation2 + $0x60] sm:$0xff] %v264
    %454 = vst [vmem:[#allocation2 + $0x68] sm:$0xff] %v266
    %455 = vst [vmem:[#allocation2 + $0x70] sm:$0xff] %v377
    %456 = vst [vmem:[#allocation2 + $0x78] sm:$0xff] %v379
    %457 = vst [vmem:[#allocation2 + $0x80] sm:$0xff] %v270
    %458 = vst [vmem:[#allocation2 + $0x88] sm:$0xff] %v272
    %459 = vst [vmem:[#allocation2 + $0x90] sm:$0xff] %v383
    %460 = vst [vmem:[#allocation2 + $0x98] sm:$0xff] %v385
    %461 = vst [vmem:[#allocation2 + $0xa0] sm:$0xff] %v274
    %462 = vst [vmem:[#allocation2 + $0xa8] sm:$0xff] %v276
    %463 = vst [vmem:[#allocation2 + $0xb0] sm:$0xff] %v387
    %464 = vst [vmem:[#allocation2 + $0xb8] sm:$0xff] %v389
    %465 = vst [vmem:[#allocation2 + $0xc0] sm:$0xff] %v280
    %466 = vst [vmem:[#allocation2 + $0xc8] sm:$0xff] %v282
    %467 = vst [vmem:[#allocation2 + $0xd0] sm:$0xff] %v393
    %468 = vst [vmem:[#allocation2 + $0xd8] sm:$0xff] %v395
    %469 = vst [vmem:[#allocation2 + $0xe0] sm:$0xff] %v284
    %470 = vst [vmem:[#allocation2 + $0xe8] sm:$0xff] %v286
    %471 = vst [vmem:[#allocation2 + $0xf0] sm:$0xff] %v397
    %472 = vst [vmem:[#allocation2 + $0xf8] sm:$0xff] %v399
    %473 = vst [vmem:[#allocation2 + $0x100] sm:$0xff] %v290
    %474 = vst [vmem:[#allocation2 + $0x108] sm:$0xff] %v292
    %475 = vst [vmem:[#allocation2 + $0x110] sm:$0xff] %v403
    %476 = vst [vmem:[#allocation2 + $0x118] sm:$0xff] %v405
    %477 = vst [vmem:[#allocation2 + $0x120] sm:$0xff] %v294
    %478 = vst [vmem:[#allocation2 + $0x128] sm:$0xff] %v296
    %479 = vst [vmem:[#allocation2 + $0x130] sm:$0xff] %v407
    %480 = vst [vmem:[#allocation2 + $0x138] sm:$0xff] %v409
    %481 = vst [vmem:[#allocation2 + $0x140] sm:$0xff] %v300
    %482 = vst [vmem:[#allocation2 + $0x148] sm:$0xff] %v302
    %483 = vst [vmem:[#allocation2 + $0x150] sm:$0xff] %v413
    %484 = vst [vmem:[#allocation2 + $0x158] sm:$0xff] %v415
    %485 = vst [vmem:[#allocation2 + $0x160] sm:$0xff] %v304
    %486 = vst [vmem:[#allocation2 + $0x168] sm:$0xff] %v306
    %487 = vst [vmem:[#allocation2 + $0x170] sm:$0xff] %v417
    %488 = vst [vmem:[#allocation2 + $0x178] sm:$0xff] %v419
    %489 = vst [vmem:[#allocation2 + $0x180] sm:$0xff] %v310
    %490 = vst [vmem:[#allocation2 + $0x188] sm:$0xff] %v312
    %491 = vst [vmem:[#allocation2 + $0x190] sm:$0xff] %v423
    %492 = vst [vmem:[#allocation2 + $0x198] sm:$0xff] %v425
    %493 = vst [vmem:[#allocation2 + $0x1a0] sm:$0xff] %v314
    %494 = vst [vmem:[#allocation2 + $0x1a8] sm:$0xff] %v316
    %495 = vst [vmem:[#allocation2 + $0x1b0] sm:$0xff] %v427
    %496 = vst [vmem:[#allocation2 + $0x1b8] sm:$0xff] %v429
    %497 = vst [vmem:[#allocation2 + $0x1c0] sm:$0xff] %v320
    %498 = vst [vmem:[#allocation2 + $0x1c8] sm:$0xff] %v322
    %499 = vst [vmem:[#allocation2 + $0x1d0] sm:$0xff] %v433
    %500 = vst [vmem:[#allocation2 + $0x1d8] sm:$0xff] %v435
    %501 = vst [vmem:[#allocation2 + $0x1e0] sm:$0xff] %v324
    %502 = vst [vmem:[#allocation2 + $0x1e8] sm:$0xff] %v326
    %503 = vst [vmem:[#allocation2 + $0x1f0] sm:$0xff] %v437
    %504 = vst [vmem:[#allocation2 + $0x1f8] sm:$0xff] %v439
    %v505 = vld [vmem:[#allocation3] sm:$0xff]
    %v506 = vld [vmem:[#allocation3 + $0x8] sm:$0xff]
    %v507 = vld [vmem:[#allocation4] sm:$0xff]
    %v508 = vld [vmem:[#allocation4 + $0x8] sm:$0xff]
    %v509 = vld [vmem:[#allocation2] sm:$0xff]
    %v510 = vld [vmem:[#allocation2 + $0x8] sm:$0xff]
    %v511 = vld [vmem:[#allocation2 + $0x10] sm:$0xff]
    %v512 = vld [vmem:[#allocation2 + $0x18] sm:$0xff]
    %v513 = vld [vmem:[#allocation2 + $0x20] sm:$0xff]
    %v514 = vld [vmem:[#allocation2 + $0x28] sm:$0xff]
    %v515 = vld [vmem:[#allocation2 + $0x30] sm:$0xff]
    %v516 = vld [vmem:[#allocation2 + $0x38] sm:$0xff]
    %v517 = vpack.c.bf16 %v506, %v505
    %v518 = vld [vmem:[#allocation10] sm:$0xff]
    %v519 = vld [vmem:[#allocation10 + $0x8] sm:$0xff]
    %v520 = vld [vmem:[#allocation10 + $0x10] sm:$0xff]
    %v521 = vld [vmem:[#allocation10 + $0x18] sm:$0xff]
    %v522 = vld [vmem:[#allocation10 + $0x20] sm:$0xff]
    %v523 = vld [vmem:[#allocation10 + $0x28] sm:$0xff]
    %v524 = vld [vmem:[#allocation10 + $0x30] sm:$0xff]
    %v525 = vld [vmem:[#allocation10 + $0x38] sm:$0xff]
    %v526 = vld [vmem:[#allocation10 + $0x40] sm:$0xff]
    %v527 = vld [vmem:[#allocation10 + $0x48] sm:$0xff]
    %v528 = vld [vmem:[#allocation10 + $0x50] sm:$0xff]
    %v529 = vld [vmem:[#allocation10 + $0x58] sm:$0xff]
    %v530 = vld [vmem:[#allocation10 + $0x60] sm:$0xff]
    %v531 = vld [vmem:[#allocation10 + $0x68] sm:$0xff]
    %v532 = vld [vmem:[#allocation10 + $0x70] sm:$0xff]
    %v533 = vld [vmem:[#allocation10 + $0x78] sm:$0xff]
    %v534 = vld [vmem:[#allocation10 + $0x80] sm:$0xff]
    %v535 = vld [vmem:[#allocation10 + $0x88] sm:$0xff]
    %v536 = vld [vmem:[#allocation10 + $0x90] sm:$0xff]
    %v537 = vld [vmem:[#allocation10 + $0x98] sm:$0xff]
    %v538 = vld [vmem:[#allocation10 + $0xa0] sm:$0xff]
    %v539 = vld [vmem:[#allocation10 + $0xa8] sm:$0xff]
    %v540 = vld [vmem:[#allocation10 + $0xb0] sm:$0xff]
    %v541 = vld [vmem:[#allocation10 + $0xb8] sm:$0xff]
    %v542 = vld [vmem:[#allocation10 + $0xc0] sm:$0xff]
    %v543 = vld [vmem:[#allocation10 + $0xc8] sm:$0xff]
    %v544 = vld [vmem:[#allocation10 + $0xd0] sm:$0xff]
    %v545 = vld [vmem:[#allocation10 + $0xd8] sm:$0xff]
    %v546 = vld [vmem:[#allocation10 + $0xe0] sm:$0xff]
    %v547 = vld [vmem:[#allocation10 + $0xe8] sm:$0xff]
    %v548 = vld [vmem:[#allocation10 + $0xf0] sm:$0xff]
    %v549 = vld [vmem:[#allocation10 + $0xf8] sm:$0xff]
    %v582 = vunpack.c.l.b16 %v518
    %v583 = vunpack.c.h.b16 %v518
    %v584 = vunpack.c.l.b16 %v519
    %v585 = vunpack.c.h.b16 %v519
    %v586 = vunpack.c.l.b16 %v520
    %v587 = vunpack.c.h.b16 %v520
    %v588 = vunpack.c.l.b16 %v521
    %v589 = vunpack.c.h.b16 %v521
    %v590 = vunpack.c.l.b16 %v522
    %v591 = vunpack.c.h.b16 %v522
    %v592 = vunpack.c.l.b16 %v523
    %v593 = vunpack.c.h.b16 %v523
    %v594 = vunpack.c.l.b16 %v524
    %v595 = vunpack.c.h.b16 %v524
    %v596 = vunpack.c.l.b16 %v525
    %v597 = vunpack.c.h.b16 %v525
    %v598 = vunpack.c.l.b16 %v526
    %v599 = vunpack.c.h.b16 %v526
    %v600 = vunpack.c.l.b16 %v527
    %v601 = vunpack.c.h.b16 %v527
    %v602 = vunpack.c.l.b16 %v528
    %v603 = vunpack.c.h.b16 %v528
    %v604 = vunpack.c.l.b16 %v529
    %v605 = vunpack.c.h.b16 %v529
    %v606 = vunpack.c.l.b16 %v530
    %v607 = vunpack.c.h.b16 %v530
    %v608 = vunpack.c.l.b16 %v531
    %v609 = vunpack.c.h.b16 %v531
    %v610 = vunpack.c.l.b16 %v532
    %v611 = vunpack.c.h.b16 %v532
    %v612 = vunpack.c.l.b16 %v533
    %v613 = vunpack.c.h.b16 %v533
    %v614 = vunpack.c.l.b16 %v534
    %v615 = vunpack.c.h.b16 %v534
    %v616 = vunpack.c.l.b16 %v535
    %v617 = vunpack.c.h.b16 %v535
    %v618 = vunpack.c.l.b16 %v536
    %v619 = vunpack.c.h.b16 %v536
    %v620 = vunpack.c.l.b16 %v537
    %v621 = vunpack.c.h.b16 %v537
    %v622 = vunpack.c.l.b16 %v538
    %v623 = vunpack.c.h.b16 %v538
    %v624 = vunpack.c.l.b16 %v539
    %v625 = vunpack.c.h.b16 %v539
    %v626 = vunpack.c.l.b16 %v540
    %v627 = vunpack.c.h.b16 %v540
    %v628 = vunpack.c.l.b16 %v541
    %v629 = vunpack.c.h.b16 %v541
    %v630 = vunpack.c.l.b16 %v542
    %v631 = vunpack.c.h.b16 %v542
    %v632 = vunpack.c.l.b16 %v543
    %v633 = vunpack.c.h.b16 %v543
    %v634 = vunpack.c.l.b16 %v544
    %v635 = vunpack.c.h.b16 %v544
    %v636 = vunpack.c.l.b16 %v545
    %v637 = vunpack.c.h.b16 %v545
    %v638 = vunpack.c.l.b16 %v546
    %v639 = vunpack.c.h.b16 %v546
    %v640 = vunpack.c.l.b16 %v547
    %v641 = vunpack.c.h.b16 %v547
    %v642 = vunpack.c.l.b16 %v548
    %v643 = vunpack.c.h.b16 %v548
    %v644 = vunpack.c.l.b16 %v549
    %v645 = vunpack.c.h.b16 %v549
    %v646 = vpack.c.b16 %v586, %v582
    %v647 = vpack.c.b16 %v587, %v583
    %v648 = vpack.c.b16 %v588, %v584
    %v649 = vpack.c.b16 %v589, %v585
    %v650 = vpack.c.b16 %v594, %v590
    %v651 = vpack.c.b16 %v595, %v591
    %v652 = vpack.c.b16 %v596, %v592
    %v653 = vpack.c.b16 %v597, %v593
    %v654 = vpack.c.b16 %v602, %v598
    %v655 = vpack.c.b16 %v603, %v599
    %v656 = vpack.c.b16 %v604, %v600
    %v657 = vpack.c.b16 %v605, %v601
    %v658 = vpack.c.b16 %v610, %v606
    %v659 = vpack.c.b16 %v611, %v607
    %v660 = vpack.c.b16 %v612, %v608
    %v661 = vpack.c.b16 %v613, %v609
    %v662 = vpack.c.b16 %v618, %v614
    %v663 = vpack.c.b16 %v619, %v615
    %v664 = vpack.c.b16 %v620, %v616
    %v665 = vpack.c.b16 %v621, %v617
    %v666 = vpack.c.b16 %v626, %v622
    %v667 = vpack.c.b16 %v627, %v623
    %v668 = vpack.c.b16 %v628, %v624
    %v669 = vpack.c.b16 %v629, %v625
    %v670 = vpack.c.b16 %v634, %v630
    %v671 = vpack.c.b16 %v635, %v631
    %v672 = vpack.c.b16 %v636, %v632
    %v673 = vpack.c.b16 %v637, %v633
    %v674 = vpack.c.b16 %v642, %v638
    %v675 = vpack.c.b16 %v643, %v639
    %v676 = vpack.c.b16 %v644, %v640
    %v677 = vpack.c.b16 %v645, %v641
    %710 = vmatprep.subr.bf16.mxu0 %v647
    %711 = vmatpush1.bf16.msra.mxu0 %v646
    %712 = vmatprep.subr.bf16.mxu0 %v651
    %713 = vmatpush1.bf16.msra.mxu0 %v650
    %714 = vmatprep.subr.bf16.mxu0 %v655
    %715 = vmatpush1.bf16.msra.mxu0 %v654
    %716 = vmatprep.subr.bf16.mxu0 %v659
    %717 = vmatpush1.bf16.msra.mxu0 %v658
    %718 = vmatprep.subr.bf16.mxu0 %v663
    %719 = vmatpush1.bf16.msra.mxu0 %v662
    %720 = vmatprep.subr.bf16.mxu0 %v667
    %721 = vmatpush1.bf16.msra.mxu0 %v666
    %722 = vmatprep.subr.bf16.mxu0 %v671
    %723 = vmatpush1.bf16.msra.mxu0 %v670
    %724 = vmatprep.subr.bf16.mxu0 %v675
    %725 = vmatpush1.bf16.msra.mxu0 %v674
    %726 = vmatprep.subr.bf16.mxu0 0
    %727 = vmatpush1.bf16.msra.mxu0 0
    %728 = vmatprep.subr.bf16.mxu0 0
    %729 = vmatpush1.bf16.msra.mxu0 0
    %730 = vmatprep.subr.bf16.mxu0 0
    %731 = vmatpush1.bf16.msra.mxu0 0
    %732 = vmatprep.subr.bf16.mxu0 0
    %733 = vmatpush1.bf16.msra.mxu0 0
    %734 = vmatprep.subr.bf16.mxu0 0
    %735 = vmatpush1.bf16.msra.mxu0 0
    %736 = vmatprep.subr.bf16.mxu0 0
    %737 = vmatpush1.bf16.msra.mxu0 0
    %738 = vmatprep.subr.bf16.mxu0 0
    %739 = vmatpush1.bf16.msra.mxu0 0
    %740 = vmatprep.subr.bf16.mxu0 0
    %741 = vmatpush1.bf16.msra.mxu0 0
    %742 = vmatprep.mubr.bf16.mxu0 0
    %743 = vmatmul.mubr.bf16.gmra.mrb[0].mxu0 %v517
    %v744 = vpop.f32.mrb[0].mxu0
    %v745 = vadd.f32 0.0, %v744
    %v746 = vpop.f32.mrb[0].mxu0
    %v747 = vadd.f32 0.0, %v746
    %v748 = vpop.f32.mrb[0].mxu0
    %v749 = vadd.f32 0.0, %v748
    %v750 = vpop.f32.mrb[0].mxu0
    %v751 = vadd.f32 0.0, %v750
    %752 = vdwg.mxu0
    %753 = vmatprep.subr.bf16.mxu0 %v649
    %754 = vmatpush1.bf16.msra.mxu0 %v648
    %755 = vmatprep.subr.bf16.mxu0 %v653
    %756 = vmatpush1.bf16.msra.mxu0 %v652
    %757 = vmatprep.subr.bf16.mxu0 %v657
    %758 = vmatpush1.bf16.msra.mxu0 %v656
    %759 = vmatprep.subr.bf16.mxu0 %v661
    %760 = vmatpush1.bf16.msra.mxu0 %v660
    %761 = vmatprep.subr.bf16.mxu0 %v665
    %762 = vmatpush1.bf16.msra.mxu0 %v664
    %763 = vmatprep.subr.bf16.mxu0 %v669
    %764 = vmatpush1.bf16.msra.mxu0 %v668
    %765 = vmatprep.subr.bf16.mxu0 %v673
    %766 = vmatpush1.bf16.msra.mxu0 %v672
    %767 = vmatprep.subr.bf16.mxu0 %v677
    %768 = vmatpush1.bf16.msra.mxu0 %v676
    %769 = vmatprep.subr.bf16.mxu0 0
    %770 = vmatpush1.bf16.msra.mxu0 0
    %771 = vmatprep.subr.bf16.mxu0 0
    %772 = vmatpush1.bf16.msra.mxu0 0
    %773 = vmatprep.subr.bf16.mxu0 0
    %774 = vmatpush1.bf16.msra.mxu0 0
    %775 = vmatprep.subr.bf16.mxu0 0
    %776 = vmatpush1.bf16.msra.mxu0 0
    %777 = vmatprep.subr.bf16.mxu0 0
    %778 = vmatpush1.bf16.msra.mxu0 0
    %779 = vmatprep.subr.bf16.mxu0 0
    %780 = vmatpush1.bf16.msra.mxu0 0
    %781 = vmatprep.subr.bf16.mxu0 0
    %782 = vmatpush1.bf16.msra.mxu0 0
    %783 = vmatprep.subr.bf16.mxu0 0
    %784 = vmatpush1.bf16.msra.mxu0 0
    %785 = vmatprep.mubr.bf16.mxu0 0
    %786 = vmatmul.mubr.bf16.gmra.mrb[0].mxu0 %v517
    %v787 = vpop.f32.mrb[0].mxu0
    %v788 = vadd.f32 0.0, %v787
    %v789 = vpop.f32.mrb[0].mxu0
    %v790 = vadd.f32 0.0, %v789
    %v791 = vpop.f32.mrb[0].mxu0
    %v792 = vadd.f32 0.0, %v791
    %v793 = vpop.f32.mrb[0].mxu0
    %v794 = vadd.f32 0.0, %v793
    %795 = vdwg.mxu0
    %v796 = vadd.f32 %v509, %v745
    %v797 = vadd.f32 %v510, %v747
    %v798 = vadd.f32 %v511, %v788
    %v799 = vadd.f32 %v512, %v790
    %v800 = vadd.f32 %v513, %v749
    %v801 = vadd.f32 %v514, %v751
    %v802 = vadd.f32 %v515, %v792
    %v803 = vadd.f32 %v516, %v794
    %v804 = vxor.u32 %v796, 2147483648
    %v805 = vxor.u32 %v800, 2147483648
    %v806 = vmul.f32 %v804, 1.442695
    %v807 = vpow.pop %v806
    %v808 = vmul.f32 %v805, 1.442695
    %v809 = vpow.pop %v808
    %v810 = vadd.f32 %v807, 1.0
    %v811 = vadd.f32 %v809, 1.0
    %v812 = vrcp.pop %v810
    %v813 = vmul.f32 1.0, %v812
    %v814 = vrcp.pop %v811
    %v815 = vmul.f32 1.0, %v814
    %v816 = vxor.u32 %v797, 2147483648
    %v817 = vxor.u32 %v801, 2147483648
    %v818 = vmul.f32 %v816, 1.442695
    %v819 = vpow.pop %v818
    %v820 = vmul.f32 %v817, 1.442695
    %v821 = vpow.pop %v820
    %v822 = vadd.f32 %v819, 1.0
    %v823 = vadd.f32 %v821, 1.0
    %v824 = vrcp.pop %v822
    %v825 = vmul.f32 1.0, %v824
    %v826 = vrcp.pop %v823
    %v827 = vmul.f32 1.0, %v826
    %v828 = vtanh.pop %v798
    %v829 = vtanh.pop %v802
    %v830 = vxor.u32 %v799, 2147483648
    %v831 = vxor.u32 %v803, 2147483648
    %v832 = vmul.f32 %v830, 1.442695
    %v833 = vpow.pop %v832
    %v834 = vmul.f32 %v831, 1.442695
    %v835 = vpow.pop %v834
    %v836 = vadd.f32 %v833, 1.0
    %v837 = vadd.f32 %v835, 1.0
    %v838 = vrcp.pop %v836
    %v839 = vmul.f32 1.0, %v838
    %v840 = vrcp.pop %v837
    %v841 = vmul.f32 1.0, %v840
    %v842 = vmul.f32 %v825, %v507
    %v843 = vmul.f32 %v827, %v508
    %v844 = vmul.f32 %v813, %v828
    %v845 = vmul.f32 %v815, %v829
    %v846 = vadd.f32 %v842, %v844
    %v847 = vadd.f32 %v843, %v845
    %v848 = vtanh.pop %v846
    %v849 = vtanh.pop %v847
    %v850 = vmul.f32 %v839, %v848
    %v851 = vmul.f32 %v841, %v849
    %s852 = scalar_lea.vmem [#allocation2], 64
    %v853 = vld [vmem:[%s852] sm:$0xff]
    %v854 = vld [vmem:[%s852 + $0x8] sm:$0xff]
    %v855 = vld [vmem:[%s852 + $0x10] sm:$0xff]
    %v856 = vld [vmem:[%s852 + $0x18] sm:$0xff]
    %v857 = vld [vmem:[%s852 + $0x20] sm:$0xff]
    %v858 = vld [vmem:[%s852 + $0x28] sm:$0xff]
    %v859 = vld [vmem:[%s852 + $0x30] sm:$0xff]
    %v860 = vld [vmem:[%s852 + $0x38] sm:$0xff]
    %v861 = vpack.c.bf16 %v851, %v850
    %862 = vmatprep.subr.bf16.mxu0 %v647
    %863 = vmatpush1.bf16.msra.mxu0 %v646
    %864 = vmatprep.subr.bf16.mxu0 %v651
    %865 = vmatpush1.bf16.msra.mxu0 %v650
    %866 = vmatprep.subr.bf16.mxu0 %v655
    %867 = vmatpush1.bf16.msra.mxu0 %v654
    %868 = vmatprep.subr.bf16.mxu0 %v659
    %869 = vmatpush1.bf16.msra.mxu0 %v658
    %870 = vmatprep.subr.bf16.mxu0 %v663
    %871 = vmatpush1.bf16.msra.mxu0 %v662
    %872 = vmatprep.subr.bf16.mxu0 %v667
    %873 = vmatpush1.bf16.msra.mxu0 %v666
    %874 = vmatprep.subr.bf16.mxu0 %v671
    %875 = vmatpush1.bf16.msra.mxu0 %v670
    %876 = vmatprep.subr.bf16.mxu0 %v675
    %877 = vmatpush1.bf16.msra.mxu0 %v674
    %878 = vmatprep.subr.bf16.mxu0 0
    %879 = vmatpush1.bf16.msra.mxu0 0
    %880 = vmatprep.subr.bf16.mxu0 0
    %881 = vmatpush1.bf16.msra.mxu0 0
    %882 = vmatprep.subr.bf16.mxu0 0
    %883 = vmatpush1.bf16.msra.mxu0 0
    %884 = vmatprep.subr.bf16.mxu0 0
    %885 = vmatpush1.bf16.msra.mxu0 0
    %886 = vmatprep.subr.bf16.mxu0 0
    %887 = vmatpush1.bf16.msra.mxu0 0
    %888 = vmatprep.subr.bf16.mxu0 0
    %889 = vmatpush1.bf16.msra.mxu0 0
    %890 = vmatprep.subr.bf16.mxu0 0
    %891 = vmatpush1.bf16.msra.mxu0 0
    %892 = vmatprep.subr.bf16.mxu0 0
    %893 = vmatpush1.bf16.msra.mxu0 0
    %894 = vmatprep.mubr.bf16.mxu0 0
    %895 = vmatmul.mubr.bf16.gmra.mrb[0].mxu0 %v861
    %v896 = vpop.f32.mrb[0].mxu0
    %v897 = vadd.f32 0.0, %v896
    %v898 = vpop.f32.mrb[0].mxu0
    %v899 = vadd.f32 0.0, %v898
    %v900 = vpop.f32.mrb[0].mxu0
    %v901 = vadd.f32 0.0, %v900
    %v902 = vpop.f32.mrb[0].mxu0
    %v903 = vadd.f32 0.0, %v902
    %904 = vdwg.mxu0
    %905 = vmatprep.subr.bf16.mxu0 %v649
    %906 = vmatpush1.bf16.msra.mxu0 %v648
    %907 = vmatprep.subr.bf16.mxu0 %v653
    %908 = vmatpush1.bf16.msra.mxu0 %v652
    %909 = vmatprep.subr.bf16.mxu0 %v657
    %910 = vmatpush1.bf16.msra.mxu0 %v656
    %911 = vmatprep.subr.bf16.mxu0 %v661
    %912 = vmatpush1.bf16.msra.mxu0 %v660
    %913 = vmatprep.subr.bf16.mxu0 %v665
    %914 = vmatpush1.bf16.msra.mxu0 %v664
    %915 = vmatprep.subr.bf16.mxu0 %v669
    %916 = vmatpush1.bf16.msra.mxu0 %v668
    %917 = vmatprep.subr.bf16.mxu0 %v673
    %918 = vmatpush1.bf16.msra.mxu0 %v672
    %919 = vmatprep.subr.bf16.mxu0 %v677
    %920 = vmatpush1.bf16.msra.mxu0 %v676
    %921 = vmatprep.subr.bf16.mxu0 0
    %922 = vmatpush1.bf16.msra.mxu0 0
    %923 = vmatprep.subr.bf16.mxu0 0
    %924 = vmatpush1.bf16.msra.mxu0 0
    %925 = vmatprep.subr.bf16.mxu0 0
    %926 = vmatpush1.bf16.msra.mxu0 0
    %927 = vmatprep.subr.bf16.mxu0 0
    %928 = vmatpush1.bf16.msra.mxu0 0
    %929 = vmatprep.subr.bf16.mxu0 0
    %930 = vmatpush1.bf16.msra.mxu0 0
    %931 = vmatprep.subr.bf16.mxu0 0
    %932 = vmatpush1.bf16.msra.mxu0 0
    %933 = vmatprep.subr.bf16.mxu0 0
    %934 = vmatpush1.bf16.msra.mxu0 0
    %935 = vmatprep.subr.bf16.mxu0 0
    %936 = vmatpush1.bf16.msra.mxu0 0
    %937 = vmatprep.mubr.bf16.mxu0 0
    %938 = vmatmul.mubr.bf16.gmra.mrb[0].mxu0 %v861
    %v939 = vpop.f32.mrb[0].mxu0
    %v940 = vadd.f32 0.0, %v939
    %v941 = vpop.f32.mrb[0].mxu0
    %v942 = vadd.f32 0.0, %v941
    %v943 = vpop.f32.mrb[0].mxu0
    %v944 = vadd.f32 0.0, %v943
    %v945 = vpop.f32.mrb[0].mxu0
    %v946 = vadd.f32 0.0, %v945
    %947 = vdwg.mxu0
    %v948 = vadd.f32 %v853, %v897
    %v949 = vadd.f32 %v854, %v899
    %v950 = vadd.f32 %v855, %v940
    %v951 = vadd.f32 %v856, %v942
    %v952 = vadd.f32 %v857, %v901
    %v953 = vadd.f32 %v858, %v903
    %v954 = vadd.f32 %v859, %v944
    %v955 = vadd.f32 %v860, %v946
    %v956 = vxor.u32 %v948, 2147483648
    %v957 = vxor.u32 %v952, 2147483648
    %v958 = vmul.f32 %v956, 1.442695
    %v959 = vpow.pop %v958
    %v960 = vmul.f32 %v957, 1.442695
    %v961 = vpow.pop %v960
    %v962 = vadd.f32 %v959, 1.0
    %v963 = vadd.f32 %v961, 1.0
    %v964 = vrcp.pop %v962
    %v965 = vmul.f32 1.0, %v964
    %v966 = vrcp.pop %v963
    %v967 = vmul.f32 1.0, %v966
    %v968 = vxor.u32 %v949, 2147483648
    %v969 = vxor.u32 %v953, 2147483648
    %v970 = vmul.f32 %v968, 1.442695
    %v971 = vpow.pop %v970
    %v972 = vmul.f32 %v969, 1.442695
    %v973 = vpow.pop %v972
    %v974 = vadd.f32 %v971, 1.0
    %v975 = vadd.f32 %v973, 1.0
    %v976 = vrcp.pop %v974
    %v977 = vmul.f32 1.0, %v976
    %v978 = vrcp.pop %v975
    %v979 = vmul.f32 1.0, %v978
    %v980 = vtanh.pop %v950
    %v981 = vtanh.pop %v954
    %v982 = vxor.u32 %v951, 2147483648
    %v983 = vxor.u32 %v955, 2147483648
    %v984 = vmul.f32 %v982, 1.442695
    %v985 = vpow.pop %v984
    %v986 = vmul.f32 %v983, 1.442695
    %v987 = vpow.pop %v986
    %v988 = vadd.f32 %v985, 1.0
    %v989 = vadd.f32 %v987, 1.0
    %v990 = vrcp.pop %v988
    %v991 = vmul.f32 1.0, %v990
    %v992 = vrcp.pop %v989
    %v993 = vmul.f32 1.0, %v992
    %v994 = vmul.f32 %v977, %v846
    %v995 = vmul.f32 %v979, %v847
    %v996 = vmul.f32 %v965, %v980
    %v997 = vmul.f32 %v967, %v981
    %v998 = vadd.f32 %v994, %v996
    %v999 = vadd.f32 %v995, %v997
    %v1000 = vtanh.pop %v998
    %v1001 = vtanh.pop %v999
    %v1002 = vmul.f32 %v991, %v1000
    %v1003 = vmul.f32 %v993, %v1001
    %s1004 = scalar_lea.vmem [#allocation2], 128
    %v1005 = vld [vmem:[%s1004] sm:$0xff]
    %v1006 = vld [vmem:[%s1004 + $0x8] sm:$0xff]
    %v1007 = vld [vmem:[%s1004 + $0x10] sm:$0xff]
    %v1008 = vld [vmem:[%s1004 + $0x18] sm:$0xff]
    %v1009 = vld [vmem:[%s1004 + $0x20] sm:$0xff]
    %v1010 = vld [vmem:[%s1004 + $0x28] sm:$0xff]
    %v1011 = vld [vmem:[%s1004 + $0x30] sm:$0xff]
    %v1012 = vld [vmem:[%s1004 + $0x38] sm:$0xff]
    %v1013 = vpack.c.bf16 %v1003, %v1002
    %1014 = vmatprep.subr.bf16.mxu0 %v647
    %1015 = vmatpush1.bf16.msra.mxu0 %v646
    %1016 = vmatprep.subr.bf16.mxu0 %v651
    %1017 = vmatpush1.bf16.msra.mxu0 %v650
    %1018 = vmatprep.subr.bf16.mxu0 %v655
    %1019 = vmatpush1.bf16.msra.mxu0 %v654
    %1020 = vmatprep.subr.bf16.mxu0 %v659
    %1021 = vmatpush1.bf16.msra.mxu0 %v658
    %1022 = vmatprep.subr.bf16.mxu0 %v663
    %1023 = vmatpush1.bf16.msra.mxu0 %v662
    %1024 = vmatprep.subr.bf16.mxu0 %v667
    %1025 = vmatpush1.bf16.msra.mxu0 %v666
    %1026 = vmatprep.subr.bf16.mxu0 %v671
    %1027 = vmatpush1.bf16.msra.mxu0 %v670
    %1028 = vmatprep.subr.bf16.mxu0 %v675
    %1029 = vmatpush1.bf16.msra.mxu0 %v674
    %1030 = vmatprep.subr.bf16.mxu0 0
    %1031 = vmatpush1.bf16.msra.mxu0 0
    %1032 = vmatprep.subr.bf16.mxu0 0
    %1033 = vmatpush1.bf16.msra.mxu0 0
    %1034 = vmatprep.subr.bf16.mxu0 0
    %1035 = vmatpush1.bf16.msra.mxu0 0
    %1036 = vmatprep.subr.bf16.mxu0 0
    %1037 = vmatpush1.bf16.msra.mxu0 0
    %1038 = vmatprep.subr.bf16.mxu0 0
    %1039 = vmatpush1.bf16.msra.mxu0 0
    %1040 = vmatprep.subr.bf16.mxu0 0
    %1041 = vmatpush1.bf16.msra.mxu0 0
    %1042 = vmatprep.subr.bf16.mxu0 0
    %1043 = vmatpush1.bf16.msra.mxu0 0
    %1044 = vmatprep.subr.bf16.mxu0 0
    %1045 = vmatpush1.bf16.msra.mxu0 0
    %1046 = vmatprep.mubr.bf16.mxu0 0
    %1047 = vmatmul.mubr.bf16.gmra.mrb[0].mxu0 %v1013
    %v1048 = vpop.f32.mrb[0].mxu0
    %v1049 = vadd.f32 0.0, %v1048
    %v1050 = vpop.f32.mrb[0].mxu0
    %v1051 = vadd.f32 0.0, %v1050
    %v1052 = vpop.f32.mrb[0].mxu0
    %v1053 = vadd.f32 0.0, %v1052
    %v1054 = vpop.f32.mrb[0].mxu0
    %v1055 = vadd.f32 0.0, %v1054
    %1056 = vdwg.mxu0
    %1057 = vmatprep.subr.bf16.mxu0 %v649
    %1058 = vmatpush1.bf16.msra.mxu0 %v648
    %1059 = vmatprep.subr.bf16.mxu0 %v653
    %1060 = vmatpush1.bf16.msra.mxu0 %v652
    %1061 = vmatprep.subr.bf16.mxu0 %v657
    %1062 = vmatpush1.bf16.msra.mxu0 %v656
    %1063 = vmatprep.subr.bf16.mxu0 %v661
    %1064 = vmatpush1.bf16.msra.mxu0 %v660
    %1065 = vmatprep.subr.bf16.mxu0 %v665
    %1066 = vmatpush1.bf16.msra.mxu0 %v664
    %1067 = vmatprep.subr.bf16.mxu0 %v669
    %1068 = vmatpush1.bf16.msra.mxu0 %v668
    %1069 = vmatprep.subr.bf16.mxu0 %v673
    %1070 = vmatpush1.bf16.msra.mxu0 %v672
    %1071 = vmatprep.subr.bf16.mxu0 %v677
    %1072 = vmatpush1.bf16.msra.mxu0 %v676
    %1073 = vmatprep.subr.bf16.mxu0 0
    %1074 = vmatpush1.bf16.msra.mxu0 0
    %1075 = vmatprep.subr.bf16.mxu0 0
    %1076 = vmatpush1.bf16.msra.mxu0 0
    %1077 = vmatprep.subr.bf16.mxu0 0
    %1078 = vmatpush1.bf16.msra.mxu0 0
    %1079 = vmatprep.subr.bf16.mxu0 0
    %1080 = vmatpush1.bf16.msra.mxu0 0
    %1081 = vmatprep.subr.bf16.mxu0 0
    %1082 = vmatpush1.bf16.msra.mxu0 0
    %1083 = vmatprep.subr.bf16.mxu0 0
    %1084 = vmatpush1.bf16.msra.mxu0 0
    %1085 = vmatprep.subr.bf16.mxu0 0
    %1086 = vmatpush1.bf16.msra.mxu0 0
    %1087 = vmatprep.subr.bf16.mxu0 0
    %1088 = vmatpush1.bf16.msra.mxu0 0
    %1089 = vmatprep.mubr.bf16.mxu0 0
    %1090 = vmatmul.mubr.bf16.gmra.mrb[0].mxu0 %v1013
    %v1091 = vpop.f32.mrb[0].mxu0
    %v1092 = vadd.f32 0.0, %v1091
    %v1093 = vpop.f32.mrb[0].mxu0
    %v1094 = vadd.f32 0.0, %v1093
    %v1095 = vpop.f32.mrb[0].mxu0
    %v1096 = vadd.f32 0.0, %v1095
    %v1097 = vpop.f32.mrb[0].mxu0
    %v1098 = vadd.f32 0.0, %v1097
    %1099 = vdwg.mxu0
    %v1100 = vadd.f32 %v1005, %v1049
    %v1101 = vadd.f32 %v1006, %v1051
    %v1102 = vadd.f32 %v1007, %v1092
    %v1103 = vadd.f32 %v1008, %v1094
    %v1104 = vadd.f32 %v1009, %v1053
    %v1105 = vadd.f32 %v1010, %v1055
    %v1106 = vadd.f32 %v1011, %v1096
    %v1107 = vadd.f32 %v1012, %v1098
    %v1108 = vxor.u32 %v1100, 2147483648
    %v1109 = vxor.u32 %v1104, 2147483648
    %v1110 = vmul.f32 %v1108, 1.442695
    %v1111 = vpow.pop %v1110
    %v1112 = vmul.f32 %v1109, 1.442695
    %v1113 = vpow.pop %v1112
    %v1114 = vadd.f32 %v1111, 1.0
    %v1115 = vadd.f32 %v1113, 1.0
    %v1116 = vrcp.pop %v1114
    %v1117 = vmul.f32 1.0, %v1116
    %v1118 = vrcp.pop %v1115
    %v1119 = vmul.f32 1.0, %v1118
    %v1120 = vxor.u32 %v1101, 2147483648
    %v1121 = vxor.u32 %v1105, 2147483648
    %v1122 = vmul.f32 %v1120, 1.442695
    %v1123 = vpow.pop %v1122
    %v1124 = vmul.f32 %v1121, 1.442695
    %v1125 = vpow.pop %v1124
    %v1126 = vadd.f32 %v1123, 1.0
    %v1127 = vadd.f32 %v1125, 1.0
    %v1128 = vrcp.pop %v1126
    %v1129 = vmul.f32 1.0, %v1128
    %v1130 = vrcp.pop %v1127
    %v1131 = vmul.f32 1.0, %v1130
    %v1132 = vtanh.pop %v1102
    %v1133 = vtanh.pop %v1106
    %v1134 = vxor.u32 %v1103, 2147483648
    %v1135 = vxor.u32 %v1107, 2147483648
    %v1136 = vmul.f32 %v1134, 1.442695
    %v1137 = vpow.pop %v1136
    %v1138 = vmul.f32 %v1135, 1.442695
    %v1139 = vpow.pop %v1138
    %v1140 = vadd.f32 %v1137, 1.0
    %v1141 = vadd.f32 %v1139, 1.0
    %v1142 = vrcp.pop %v1140
    %v1143 = vmul.f32 1.0, %v1142
    %v1144 = vrcp.pop %v1141
    %v1145 = vmul.f32 1.0, %v1144
    %v1146 = vmul.f32 %v1129, %v998
    %v1147 = vmul.f32 %v1131, %v999
    %v1148 = vmul.f32 %v1117, %v1132
    %v1149 = vmul.f32 %v1119, %v1133
    %v1150 = vadd.f32 %v1146, %v1148
    %v1151 = vadd.f32 %v1147, %v1149
    %v1152 = vtanh.pop %v1150
    %v1153 = vtanh.pop %v1151
    %v1154 = vmul.f32 %v1143, %v1152
    %v1155 = vmul.f32 %v1145, %v1153
    %s1156 = scalar_lea.vmem [#allocation2], 192
    %v1157 = vld [vmem:[%s1156] sm:$0xff]
    %v1158 = vld [vmem:[%s1156 + $0x8] sm:$0xff]
    %v1159 = vld [vmem:[%s1156 + $0x10] sm:$0xff]
    %v1160 = vld [vmem:[%s1156 + $0x18] sm:$0xff]
    %v1161 = vld [vmem:[%s1156 + $0x20] sm:$0xff]
    %v1162 = vld [vmem:[%s1156 + $0x28] sm:$0xff]
    %v1163 = vld [vmem:[%s1156 + $0x30] sm:$0xff]
    %v1164 = vld [vmem:[%s1156 + $0x38] sm:$0xff]
    %v1165 = vpack.c.bf16 %v1155, %v1154
    %1166 = vmatprep.subr.bf16.mxu0 %v647
    %1167 = vmatpush1.bf16.msra.mxu0 %v646
    %1168 = vmatprep.subr.bf16.mxu0 %v651
    %1169 = vmatpush1.bf16.msra.mxu0 %v650
    %1170 = vmatprep.subr.bf16.mxu0 %v655
    %1171 = vmatpush1.bf16.msra.mxu0 %v654
    %1172 = vmatprep.subr.bf16.mxu0 %v659
    %1173 = vmatpush1.bf16.msra.mxu0 %v658
    %1174 = vmatprep.subr.bf16.mxu0 %v663
    %1175 = vmatpush1.bf16.msra.mxu0 %v662
    %1176 = vmatprep.subr.bf16.mxu0 %v667
    %1177 = vmatpush1.bf16.msra.mxu0 %v666
    %1178 = vmatprep.subr.bf16.mxu0 %v671
    %1179 = vmatpush1.bf16.msra.mxu0 %v670
    %1180 = vmatprep.subr.bf16.mxu0 %v675
    %1181 = vmatpush1.bf16.msra.mxu0 %v674
    %1182 = vmatprep.subr.bf16.mxu0 0
    %1183 = vmatpush1.bf16.msra.mxu0 0
    %1184 = vmatprep.subr.bf16.mxu0 0
    %1185 = vmatpush1.bf16.msra.mxu0 0
    %1186 = vmatprep.subr.bf16.mxu0 0
    %1187 = vmatpush1.bf16.msra.mxu0 0
    %1188 = vmatprep.subr.bf16.mxu0 0
    %1189 = vmatpush1.bf16.msra.mxu0 0
    %1190 = vmatprep.subr.bf16.mxu0 0
    %1191 = vmatpush1.bf16.msra.mxu0 0
    %1192 = vmatprep.subr.bf16.mxu0 0
    %1193 = vmatpush1.bf16.msra.mxu0 0
    %1194 = vmatprep.subr.bf16.mxu0 0
    %1195 = vmatpush1.bf16.msra.mxu0 0
    %1196 = vmatprep.subr.bf16.mxu0 0
    %1197 = vmatpush1.bf16.msra.mxu0 0
    %1198 = vmatprep.mubr.bf16.mxu0 0
    %1199 = vmatmul.mubr.bf16.gmra.mrb[0].mxu0 %v1165
    %v1200 = vpop.f32.mrb[0].mxu0
    %v1201 = vadd.f32 0.0, %v1200
    %v1202 = vpop.f32.mrb[0].mxu0
    %v1203 = vadd.f32 0.0, %v1202
    %v1204 = vpop.f32.mrb[0].mxu0
    %v1205 = vadd.f32 0.0, %v1204
    %v1206 = vpop.f32.mrb[0].mxu0
    %v1207 = vadd.f32 0.0, %v1206
    %1208 = vdwg.mxu0
    %1209 = vmatprep.subr.bf16.mxu0 %v649
    %1210 = vmatpush1.bf16.msra.mxu0 %v648
    %1211 = vmatprep.subr.bf16.mxu0 %v653
    %1212 = vmatpush1.bf16.msra.mxu0 %v652
    %1213 = vmatprep.subr.bf16.mxu0 %v657
    %1214 = vmatpush1.bf16.msra.mxu0 %v656
    %1215 = vmatprep.subr.bf16.mxu0 %v661
    %1216 = vmatpush1.bf16.msra.mxu0 %v660
    %1217 = vmatprep.subr.bf16.mxu0 %v665
    %1218 = vmatpush1.bf16.msra.mxu0 %v664
    %1219 = vmatprep.subr.bf16.mxu0 %v669
    %1220 = vmatpush1.bf16.msra.mxu0 %v668
    %1221 = vmatprep.subr.bf16.mxu0 %v673
    %1222 = vmatpush1.bf16.msra.mxu0 %v672
    %1223 = vmatprep.subr.bf16.mxu0 %v677
    %1224 = vmatpush1.bf16.msra.mxu0 %v676
    %1225 = vmatprep.subr.bf16.mxu0 0
    %1226 = vmatpush1.bf16.msra.mxu0 0
    %1227 = vmatprep.subr.bf16.mxu0 0
    %1228 = vmatpush1.bf16.msra.mxu0 0
    %1229 = vmatprep.subr.bf16.mxu0 0
    %1230 = vmatpush1.bf16.msra.mxu0 0
    %1231 = vmatprep.subr.bf16.mxu0 0
    %1232 = vmatpush1.bf16.msra.mxu0 0
    %1233 = vmatprep.subr.bf16.mxu0 0
    %1234 = vmatpush1.bf16.msra.mxu0 0
    %1235 = vmatprep.subr.bf16.mxu0 0
    %1236 = vmatpush1.bf16.msra.mxu0 0
    %1237 = vmatprep.subr.bf16.mxu0 0
    %1238 = vmatpush1.bf16.msra.mxu0 0
    %1239 = vmatprep.subr.bf16.mxu0 0
    %1240 = vmatpush1.bf16.msra.mxu0 0
    %1241 = vmatprep.mubr.bf16.mxu0 0
    %1242 = vmatmul.mubr.bf16.gmra.mrb[0].mxu0 %v1165
    %v1243 = vpop.f32.mrb[0].mxu0
    %v1244 = vadd.f32 0.0, %v1243
    %v1245 = vpop.f32.mrb[0].mxu0
    %v1246 = vadd.f32 0.0, %v1245
    %v1247 = vpop.f32.mrb[0].mxu0
    %v1248 = vadd.f32 0.0, %v1247
    %v1249 = vpop.f32.mrb[0].mxu0
    %v1250 = vadd.f32 0.0, %v1249
    %1251 = vdwg.mxu0
    %v1252 = vadd.f32 %v1157, %v1201
    %v1253 = vadd.f32 %v1158, %v1203
    %v1254 = vadd.f32 %v1159, %v1244
    %v1255 = vadd.f32 %v1160, %v1246
    %v1256 = vadd.f32 %v1161, %v1205
    %v1257 = vadd.f32 %v1162, %v1207
    %v1258 = vadd.f32 %v1163, %v1248
    %v1259 = vadd.f32 %v1164, %v1250
    %v1260 = vxor.u32 %v1252, 2147483648
    %v1261 = vxor.u32 %v1256, 2147483648
    %v1262 = vmul.f32 %v1260, 1.442695
    %v1263 = vpow.pop %v1262
    %v1264 = vmul.f32 %v1261, 1.442695
    %v1265 = vpow.pop %v1264
    %v1266 = vadd.f32 %v1263, 1.0
    %v1267 = vadd.f32 %v1265, 1.0
    %v1268 = vrcp.pop %v1266
    %v1269 = vmul.f32 1.0, %v1268
    %v1270 = vrcp.pop %v1267
    %v1271 = vmul.f32 1.0, %v1270
    %v1272 = vxor.u32 %v1253, 2147483648
    %v1273 = vxor.u32 %v1257, 2147483648
    %v1274 = vmul.f32 %v1272, 1.442695
    %v1275 = vpow.pop %v1274
    %v1276 = vmul.f32 %v1273, 1.442695
    %v1277 = vpow.pop %v1276
    %v1278 = vadd.f32 %v1275, 1.0
    %v1279 = vadd.f32 %v1277, 1.0
    %v1280 = vrcp.pop %v1278
    %v1281 = vmul.f32 1.0, %v1280
    %v1282 = vrcp.pop %v1279
    %v1283 = vmul.f32 1.0, %v1282
    %v1284 = vtanh.pop %v1254
    %v1285 = vtanh.pop %v1258
    %v1286 = vxor.u32 %v1255, 2147483648
    %v1287 = vxor.u32 %v1259, 2147483648
    %v1288 = vmul.f32 %v1286, 1.442695
    %v1289 = vpow.pop %v1288
    %v1290 = vmul.f32 %v1287, 1.442695
    %v1291 = vpow.pop %v1290
    %v1292 = vadd.f32 %v1289, 1.0
    %v1293 = vadd.f32 %v1291, 1.0
    %v1294 = vrcp.pop %v1292
    %v1295 = vmul.f32 1.0, %v1294
    %v1296 = vrcp.pop %v1293
    %v1297 = vmul.f32 1.0, %v1296
    %v1298 = vmul.f32 %v1281, %v1150
    %v1299 = vmul.f32 %v1283, %v1151
    %v1300 = vmul.f32 %v1269, %v1284
    %v1301 = vmul.f32 %v1271, %v1285
    %v1302 = vadd.f32 %v1298, %v1300
    %v1303 = vadd.f32 %v1299, %v1301
    %v1304 = vtanh.pop %v1302
    %v1305 = vtanh.pop %v1303
    %v1306 = vmul.f32 %v1295, %v1304
    %v1307 = vmul.f32 %v1297, %v1305
    %s1308 = scalar_lea.vmem [#allocation2], 256
    %v1309 = vld [vmem:[%s1308] sm:$0xff]
    %v1310 = vld [vmem:[%s1308 + $0x8] sm:$0xff]
    %v1311 = vld [vmem:[%s1308 + $0x10] sm:$0xff]
    %v1312 = vld [vmem:[%s1308 + $0x18] sm:$0xff]
    %v1313 = vld [vmem:[%s1308 + $0x20] sm:$0xff]
    %v1314 = vld [vmem:[%s1308 + $0x28] sm:$0xff]
    %v1315 = vld [vmem:[%s1308 + $0x30] sm:$0xff]
    %v1316 = vld [vmem:[%s1308 + $0x38] sm:$0xff]
    %v1317 = vpack.c.bf16 %v1307, %v1306
    %1318 = vmatprep.subr.bf16.mxu0 %v647
    %1319 = vmatpush1.bf16.msra.mxu0 %v646
    %1320 = vmatprep.subr.bf16.mxu0 %v651
    %1321 = vmatpush1.bf16.msra.mxu0 %v650
    %1322 = vmatprep.subr.bf16.mxu0 %v655
    %1323 = vmatpush1.bf16.msra.mxu0 %v654
    %1324 = vmatprep.subr.bf16.mxu0 %v659
    %1325 = vmatpush1.bf16.msra.mxu0 %v658
    %1326 = vmatprep.subr.bf16.mxu0 %v663
    %1327 = vmatpush1.bf16.msra.mxu0 %v662
    %1328 = vmatprep.subr.bf16.mxu0 %v667
    %1329 = vmatpush1.bf16.msra.mxu0 %v666
    %1330 = vmatprep.subr.bf16.mxu0 %v671
    %1331 = vmatpush1.bf16.msra.mxu0 %v670
    %1332 = vmatprep.subr.bf16.mxu0 %v675
    %1333 = vmatpush1.bf16.msra.mxu0 %v674
    %1334 = vmatprep.subr.bf16.mxu0 0
    %1335 = vmatpush1.bf16.msra.mxu0 0
    %1336 = vmatprep.subr.bf16.mxu0 0
    %1337 = vmatpush1.bf16.msra.mxu0 0
    %1338 = vmatprep.subr.bf16.mxu0 0
    %1339 = vmatpush1.bf16.msra.mxu0 0
    %1340 = vmatprep.subr.bf16.mxu0 0
    %1341 = vmatpush1.bf16.msra.mxu0 0
    %1342 = vmatprep.subr.bf16.mxu0 0
    %1343 = vmatpush1.bf16.msra.mxu0 0
    %1344 = vmatprep.subr.bf16.mxu0 0
    %1345 = vmatpush1.bf16.msra.mxu0 0
    %1346 = vmatprep.subr.bf16.mxu0 0
    %1347 = vmatpush1.bf16.msra.mxu0 0
    %1348 = vmatprep.subr.bf16.mxu0 0
    %1349 = vmatpush1.bf16.msra.mxu0 0
    %1350 = vmatprep.mubr.bf16.mxu0 0
    %1351 = vmatmul.mubr.bf16.gmra.mrb[0].mxu0 %v1317
    %v1352 = vpop.f32.mrb[0].mxu0
    %v1353 = vadd.f32 0.0, %v1352
    %v1354 = vpop.f32.mrb[0].mxu0
    %v1355 = vadd.f32 0.0, %v1354
    %v1356 = vpop.f32.mrb[0].mxu0
    %v1357 = vadd.f32 0.0, %v1356
    %v1358 = vpop.f32.mrb[0].mxu0
    %v1359 = vadd.f32 0.0, %v1358
    %1360 = vdwg.mxu0
    %1361 = vmatprep.subr.bf16.mxu0 %v649
    %1362 = vmatpush1.bf16.msra.mxu0 %v648
    %1363 = vmatprep.subr.bf16.mxu0 %v653
    %1364 = vmatpush1.bf16.msra.mxu0 %v652
    %1365 = vmatprep.subr.bf16.mxu0 %v657
    %1366 = vmatpush1.bf16.msra.mxu0 %v656
    %1367 = vmatprep.subr.bf16.mxu0 %v661
    %1368 = vmatpush1.bf16.msra.mxu0 %v660
    %1369 = vmatprep.subr.bf16.mxu0 %v665
    %1370 = vmatpush1.bf16.msra.mxu0 %v664
    %1371 = vmatprep.subr.bf16.mxu0 %v669
    %1372 = vmatpush1.bf16.msra.mxu0 %v668
    %1373 = vmatprep.subr.bf16.mxu0 %v673
    %1374 = vmatpush1.bf16.msra.mxu0 %v672
    %1375 = vmatprep.subr.bf16.mxu0 %v677
    %1376 = vmatpush1.bf16.msra.mxu0 %v676
    %1377 = vmatprep.subr.bf16.mxu0 0
    %1378 = vmatpush1.bf16.msra.mxu0 0
    %1379 = vmatprep.subr.bf16.mxu0 0
    %1380 = vmatpush1.bf16.msra.mxu0 0
    %1381 = vmatprep.subr.bf16.mxu0 0
    %1382 = vmatpush1.bf16.msra.mxu0 0
    %1383 = vmatprep.subr.bf16.mxu0 0
    %1384 = vmatpush1.bf16.msra.mxu0 0
    %1385 = vmatprep.subr.bf16.mxu0 0
    %1386 = vmatpush1.bf16.msra.mxu0 0
    %1387 = vmatprep.subr.bf16.mxu0 0
    %1388 = vmatpush1.bf16.msra.mxu0 0
    %1389 = vmatprep.subr.bf16.mxu0 0
    %1390 = vmatpush1.bf16.msra.mxu0 0
    %1391 = vmatprep.subr.bf16.mxu0 0
    %1392 = vmatpush1.bf16.msra.mxu0 0
    %1393 = vmatprep.mubr.bf16.mxu0 0
    %1394 = vmatmul.mubr.bf16.gmra.mrb[0].mxu0 %v1317
    %v1395 = vpop.f32.mrb[0].mxu0
    %v1396 = vadd.f32 0.0, %v1395
    %v1397 = vpop.f32.mrb[0].mxu0
    %v1398 = vadd.f32 0.0, %v1397
    %v1399 = vpop.f32.mrb[0].mxu0
    %v1400 = vadd.f32 0.0, %v1399
    %v1401 = vpop.f32.mrb[0].mxu0
    %v1402 = vadd.f32 0.0, %v1401
    %1403 = vdwg.mxu0
    %v1404 = vadd.f32 %v1309, %v1353
    %v1405 = vadd.f32 %v1310, %v1355
    %v1406 = vadd.f32 %v1311, %v1396
    %v1407 = vadd.f32 %v1312, %v1398
    %v1408 = vadd.f32 %v1313, %v1357
    %v1409 = vadd.f32 %v1314, %v1359
    %v1410 = vadd.f32 %v1315, %v1400
    %v1411 = vadd.f32 %v1316, %v1402
    %v1412 = vxor.u32 %v1404, 2147483648
    %v1413 = vxor.u32 %v1408, 2147483648
    %v1414 = vmul.f32 %v1412, 1.442695
    %v1415 = vpow.pop %v1414
    %v1416 = vmul.f32 %v1413, 1.442695
    %v1417 = vpow.pop %v1416
    %v1418 = vadd.f32 %v1415, 1.0
    %v1419 = vadd.f32 %v1417, 1.0
    %v1420 = vrcp.pop %v1418
    %v1421 = vmul.f32 1.0, %v1420
    %v1422 = vrcp.pop %v1419
    %v1423 = vmul.f32 1.0, %v1422
    %v1424 = vxor.u32 %v1405, 2147483648
    %v1425 = vxor.u32 %v1409, 2147483648
    %v1426 = vmul.f32 %v1424, 1.442695
    %v1427 = vpow.pop %v1426
    %v1428 = vmul.f32 %v1425, 1.442695
    %v1429 = vpow.pop %v1428
    %v1430 = vadd.f32 %v1427, 1.0
    %v1431 = vadd.f32 %v1429, 1.0
    %v1432 = vrcp.pop %v1430
    %v1433 = vmul.f32 1.0, %v1432
    %v1434 = vrcp.pop %v1431
    %v1435 = vmul.f32 1.0, %v1434
    %v1436 = vtanh.pop %v1406
    %v1437 = vtanh.pop %v1410
    %v1438 = vxor.u32 %v1407, 2147483648
    %v1439 = vxor.u32 %v1411, 2147483648
    %v1440 = vmul.f32 %v1438, 1.442695
    %v1441 = vpow.pop %v1440
    %v1442 = vmul.f32 %v1439, 1.442695
    %v1443 = vpow.pop %v1442
    %v1444 = vadd.f32 %v1441, 1.0
    %v1445 = vadd.f32 %v1443, 1.0
    %v1446 = vrcp.pop %v1444
    %v1447 = vmul.f32 1.0, %v1446
    %v1448 = vrcp.pop %v1445
    %v1449 = vmul.f32 1.0, %v1448
    %v1450 = vmul.f32 %v1433, %v1302
    %v1451 = vmul.f32 %v1435, %v1303
    %v1452 = vmul.f32 %v1421, %v1436
    %v1453 = vmul.f32 %v1423, %v1437
    %v1454 = vadd.f32 %v1450, %v1452
    %v1455 = vadd.f32 %v1451, %v1453
    %v1456 = vtanh.pop %v1454
    %v1457 = vtanh.pop %v1455
    %v1458 = vmul.f32 %v1447, %v1456
    %v1459 = vmul.f32 %v1449, %v1457
    %s1460 = scalar_lea.vmem [#allocation2], 320
    %v1461 = vld [vmem:[%s1460] sm:$0xff]
    %v1462 = vld [vmem:[%s1460 + $0x8] sm:$0xff]
    %v1463 = vld [vmem:[%s1460 + $0x10] sm:$0xff]
    %v1464 = vld [vmem:[%s1460 + $0x18] sm:$0xff]
    %v1465 = vld [vmem:[%s1460 + $0x20] sm:$0xff]
    %v1466 = vld [vmem:[%s1460 + $0x28] sm:$0xff]
    %v1467 = vld [vmem:[%s1460 + $0x30] sm:$0xff]
    %v1468 = vld [vmem:[%s1460 + $0x38] sm:$0xff]
    %v1469 = vpack.c.bf16 %v1459, %v1458
    %1470 = vmatprep.subr.bf16.mxu0 %v647
    %1471 = vmatpush1.bf16.msra.mxu0 %v646
    %1472 = vmatprep.subr.bf16.mxu0 %v651
    %1473 = vmatpush1.bf16.msra.mxu0 %v650
    %1474 = vmatprep.subr.bf16.mxu0 %v655
    %1475 = vmatpush1.bf16.msra.mxu0 %v654
    %1476 = vmatprep.subr.bf16.mxu0 %v659
    %1477 = vmatpush1.bf16.msra.mxu0 %v658
    %1478 = vmatprep.subr.bf16.mxu0 %v663
    %1479 = vmatpush1.bf16.msra.mxu0 %v662
    %1480 = vmatprep.subr.bf16.mxu0 %v667
    %1481 = vmatpush1.bf16.msra.mxu0 %v666
    %1482 = vmatprep.subr.bf16.mxu0 %v671
    %1483 = vmatpush1.bf16.msra.mxu0 %v670
    %1484 = vmatprep.subr.bf16.mxu0 %v675
    %1485 = vmatpush1.bf16.msra.mxu0 %v674
    %1486 = vmatprep.subr.bf16.mxu0 0
    %1487 = vmatpush1.bf16.msra.mxu0 0
    %1488 = vmatprep.subr.bf16.mxu0 0
    %1489 = vmatpush1.bf16.msra.mxu0 0
    %1490 = vmatprep.subr.bf16.mxu0 0
    %1491 = vmatpush1.bf16.msra.mxu0 0
    %1492 = vmatprep.subr.bf16.mxu0 0
    %1493 = vmatpush1.bf16.msra.mxu0 0
    %1494 = vmatprep.subr.bf16.mxu0 0
    %1495 = vmatpush1.bf16.msra.mxu0 0
    %1496 = vmatprep.subr.bf16.mxu0 0
    %1497 = vmatpush1.bf16.msra.mxu0 0
    %1498 = vmatprep.subr.bf16.mxu0 0
    %1499 = vmatpush1.bf16.msra.mxu0 0
    %1500 = vmatprep.subr.bf16.mxu0 0
    %1501 = vmatpush1.bf16.msra.mxu0 0
    %1502 = vmatprep.mubr.bf16.mxu0 0
    %1503 = vmatmul.mubr.bf16.gmra.mrb[0].mxu0 %v1469
    %v1504 = vpop.f32.mrb[0].mxu0
    %v1505 = vadd.f32 0.0, %v1504
    %v1506 = vpop.f32.mrb[0].mxu0
    %v1507 = vadd.f32 0.0, %v1506
    %v1508 = vpop.f32.mrb[0].mxu0
    %v1509 = vadd.f32 0.0, %v1508
    %v1510 = vpop.f32.mrb[0].mxu0
    %v1511 = vadd.f32 0.0, %v1510
    %1512 = vdwg.mxu0
    %1513 = vmatprep.subr.bf16.mxu0 %v649
    %1514 = vmatpush1.bf16.msra.mxu0 %v648
    %1515 = vmatprep.subr.bf16.mxu0 %v653
    %1516 = vmatpush1.bf16.msra.mxu0 %v652
    %1517 = vmatprep.subr.bf16.mxu0 %v657
    %1518 = vmatpush1.bf16.msra.mxu0 %v656
    %1519 = vmatprep.subr.bf16.mxu0 %v661
    %1520 = vmatpush1.bf16.msra.mxu0 %v660
    %1521 = vmatprep.subr.bf16.mxu0 %v665
    %1522 = vmatpush1.bf16.msra.mxu0 %v664
    %1523 = vmatprep.subr.bf16.mxu0 %v669
    %1524 = vmatpush1.bf16.msra.mxu0 %v668
    %1525 = vmatprep.subr.bf16.mxu0 %v673
    %1526 = vmatpush1.bf16.msra.mxu0 %v672
    %1527 = vmatprep.subr.bf16.mxu0 %v677
    %1528 = vmatpush1.bf16.msra.mxu0 %v676
    %1529 = vmatprep.subr.bf16.mxu0 0
    %1530 = vmatpush1.bf16.msra.mxu0 0
    %1531 = vmatprep.subr.bf16.mxu0 0
    %1532 = vmatpush1.bf16.msra.mxu0 0
    %1533 = vmatprep.subr.bf16.mxu0 0
    %1534 = vmatpush1.bf16.msra.mxu0 0
    %1535 = vmatprep.subr.bf16.mxu0 0
    %1536 = vmatpush1.bf16.msra.mxu0 0
    %1537 = vmatprep.subr.bf16.mxu0 0
    %1538 = vmatpush1.bf16.msra.mxu0 0
    %1539 = vmatprep.subr.bf16.mxu0 0
    %1540 = vmatpush1.bf16.msra.mxu0 0
    %1541 = vmatprep.subr.bf16.mxu0 0
    %1542 = vmatpush1.bf16.msra.mxu0 0
    %1543 = vmatprep.subr.bf16.mxu0 0
    %1544 = vmatpush1.bf16.msra.mxu0 0
    %1545 = vmatprep.mubr.bf16.mxu0 0
    %1546 = vmatmul.mubr.bf16.gmra.mrb[0].mxu0 %v1469
    %v1547 = vpop.f32.mrb[0].mxu0
    %v1548 = vadd.f32 0.0, %v1547
    %v1549 = vpop.f32.mrb[0].mxu0
    %v1550 = vadd.f32 0.0, %v1549
    %v1551 = vpop.f32.mrb[0].mxu0
    %v1552 = vadd.f32 0.0, %v1551
    %v1553 = vpop.f32.mrb[0].mxu0
    %v1554 = vadd.f32 0.0, %v1553
    %1555 = vdwg.mxu0
    %v1556 = vadd.f32 %v1461, %v1505
    %v1557 = vadd.f32 %v1462, %v1507
    %v1558 = vadd.f32 %v1463, %v1548
    %v1559 = vadd.f32 %v1464, %v1550
    %v1560 = vadd.f32 %v1465, %v1509
    %v1561 = vadd.f32 %v1466, %v1511
    %v1562 = vadd.f32 %v1467, %v1552
    %v1563 = vadd.f32 %v1468, %v1554
    %v1564 = vxor.u32 %v1556, 2147483648
    %v1565 = vxor.u32 %v1560, 2147483648
    %v1566 = vmul.f32 %v1564, 1.442695
    %v1567 = vpow.pop %v1566
    %v1568 = vmul.f32 %v1565, 1.442695
    %v1569 = vpow.pop %v1568
    %v1570 = vadd.f32 %v1567, 1.0
    %v1571 = vadd.f32 %v1569, 1.0
    %v1572 = vrcp.pop %v1570
    %v1573 = vmul.f32 1.0, %v1572
    %v1574 = vrcp.pop %v1571
    %v1575 = vmul.f32 1.0, %v1574
    %v1576 = vxor.u32 %v1557, 2147483648
    %v1577 = vxor.u32 %v1561, 2147483648
    %v1578 = vmul.f32 %v1576, 1.442695
    %v1579 = vpow.pop %v1578
    %v1580 = vmul.f32 %v1577, 1.442695
    %v1581 = vpow.pop %v1580
    %v1582 = vadd.f32 %v1579, 1.0
    %v1583 = vadd.f32 %v1581, 1.0
    %v1584 = vrcp.pop %v1582
    %v1585 = vmul.f32 1.0, %v1584
    %v1586 = vrcp.pop %v1583
    %v1587 = vmul.f32 1.0, %v1586
    %v1588 = vtanh.pop %v1558
    %v1589 = vtanh.pop %v1562
    %v1590 = vxor.u32 %v1559, 2147483648
    %v1591 = vxor.u32 %v1563, 2147483648
    %v1592 = vmul.f32 %v1590, 1.442695
    %v1593 = vpow.pop %v1592
    %v1594 = vmul.f32 %v1591, 1.442695
    %v1595 = vpow.pop %v1594
    %v1596 = vadd.f32 %v1593, 1.0
    %v1597 = vadd.f32 %v1595, 1.0
    %v1598 = vrcp.pop %v1596
    %v1599 = vmul.f32 1.0, %v1598
    %v1600 = vrcp.pop %v1597
    %v1601 = vmul.f32 1.0, %v1600
    %v1602 = vmul.f32 %v1585, %v1454
    %v1603 = vmul.f32 %v1587, %v1455
    %v1604 = vmul.f32 %v1573, %v1588
    %v1605 = vmul.f32 %v1575, %v1589
    %v1606 = vadd.f32 %v1602, %v1604
    %v1607 = vadd.f32 %v1603, %v1605
    %v1608 = vtanh.pop %v1606
    %v1609 = vtanh.pop %v1607
    %v1610 = vmul.f32 %v1599, %v1608
    %v1611 = vmul.f32 %v1601, %v1609
    %s1612 = scalar_lea.vmem [#allocation2], 384
    %v1613 = vld [vmem:[%s1612] sm:$0xff]
    %v1614 = vld [vmem:[%s1612 + $0x8] sm:$0xff]
    %v1615 = vld [vmem:[%s1612 + $0x10] sm:$0xff]
    %v1616 = vld [vmem:[%s1612 + $0x18] sm:$0xff]
    %v1617 = vld [vmem:[%s1612 + $0x20] sm:$0xff]
    %v1618 = vld [vmem:[%s1612 + $0x28] sm:$0xff]
    %v1619 = vld [vmem:[%s1612 + $0x30] sm:$0xff]
    %v1620 = vld [vmem:[%s1612 + $0x38] sm:$0xff]
    %v1621 = vpack.c.bf16 %v1611, %v1610
    %1622 = vmatprep.subr.bf16.mxu0 %v647
    %1623 = vmatpush1.bf16.msra.mxu0 %v646
    %1624 = vmatprep.subr.bf16.mxu0 %v651
    %1625 = vmatpush1.bf16.msra.mxu0 %v650
    %1626 = vmatprep.subr.bf16.mxu0 %v655
    %1627 = vmatpush1.bf16.msra.mxu0 %v654
    %1628 = vmatprep.subr.bf16.mxu0 %v659
    %1629 = vmatpush1.bf16.msra.mxu0 %v658
    %1630 = vmatprep.subr.bf16.mxu0 %v663
    %1631 = vmatpush1.bf16.msra.mxu0 %v662
    %1632 = vmatprep.subr.bf16.mxu0 %v667
    %1633 = vmatpush1.bf16.msra.mxu0 %v666
    %1634 = vmatprep.subr.bf16.mxu0 %v671
    %1635 = vmatpush1.bf16.msra.mxu0 %v670
    %1636 = vmatprep.subr.bf16.mxu0 %v675
    %1637 = vmatpush1.bf16.msra.mxu0 %v674
    %1638 = vmatprep.subr.bf16.mxu0 0
    %1639 = vmatpush1.bf16.msra.mxu0 0
    %1640 = vmatprep.subr.bf16.mxu0 0
    %1641 = vmatpush1.bf16.msra.mxu0 0
    %1642 = vmatprep.subr.bf16.mxu0 0
    %1643 = vmatpush1.bf16.msra.mxu0 0
    %1644 = vmatprep.subr.bf16.mxu0 0
    %1645 = vmatpush1.bf16.msra.mxu0 0
    %1646 = vmatprep.subr.bf16.mxu0 0
    %1647 = vmatpush1.bf16.msra.mxu0 0
    %1648 = vmatprep.subr.bf16.mxu0 0
    %1649 = vmatpush1.bf16.msra.mxu0 0
    %1650 = vmatprep.subr.bf16.mxu0 0
    %1651 = vmatpush1.bf16.msra.mxu0 0
    %1652 = vmatprep.subr.bf16.mxu0 0
    %1653 = vmatpush1.bf16.msra.mxu0 0
    %1654 = vmatprep.mubr.bf16.mxu0 0
    %1655 = vmatmul.mubr.bf16.gmra.mrb[0].mxu0 %v1621
    %v1656 = vpop.f32.mrb[0].mxu0
    %v1657 = vadd.f32 0.0, %v1656
    %v1658 = vpop.f32.mrb[0].mxu0
    %v1659 = vadd.f32 0.0, %v1658
    %v1660 = vpop.f32.mrb[0].mxu0
    %v1661 = vadd.f32 0.0, %v1660
    %v1662 = vpop.f32.mrb[0].mxu0
    %v1663 = vadd.f32 0.0, %v1662
    %1664 = vdwg.mxu0
    %1665 = vmatprep.subr.bf16.mxu0 %v649
    %1666 = vmatpush1.bf16.msra.mxu0 %v648
    %1667 = vmatprep.subr.bf16.mxu0 %v653
    %1668 = vmatpush1.bf16.msra.mxu0 %v652
    %1669 = vmatprep.subr.bf16.mxu0 %v657
    %1670 = vmatpush1.bf16.msra.mxu0 %v656
    %1671 = vmatprep.subr.bf16.mxu0 %v661
    %1672 = vmatpush1.bf16.msra.mxu0 %v660
    %1673 = vmatprep.subr.bf16.mxu0 %v665
    %1674 = vmatpush1.bf16.msra.mxu0 %v664
    %1675 = vmatprep.subr.bf16.mxu0 %v669
    %1676 = vmatpush1.bf16.msra.mxu0 %v668
    %1677 = vmatprep.subr.bf16.mxu0 %v673
    %1678 = vmatpush1.bf16.msra.mxu0 %v672
    %1679 = vmatprep.subr.bf16.mxu0 %v677
    %1680 = vmatpush1.bf16.msra.mxu0 %v676
    %1681 = vmatprep.subr.bf16.mxu0 0
    %1682 = vmatpush1.bf16.msra.mxu0 0
    %1683 = vmatprep.subr.bf16.mxu0 0
    %1684 = vmatpush1.bf16.msra.mxu0 0
    %1685 = vmatprep.subr.bf16.mxu0 0
    %1686 = vmatpush1.bf16.msra.mxu0 0
    %1687 = vmatprep.subr.bf16.mxu0 0
    %1688 = vmatpush1.bf16.msra.mxu0 0
    %1689 = vmatprep.subr.bf16.mxu0 0
    %1690 = vmatpush1.bf16.msra.mxu0 0
    %1691 = vmatprep.subr.bf16.mxu0 0
    %1692 = vmatpush1.bf16.msra.mxu0 0
    %1693 = vmatprep.subr.bf16.mxu0 0
    %1694 = vmatpush1.bf16.msra.mxu0 0
    %1695 = vmatprep.subr.bf16.mxu0 0
    %1696 = vmatpush1.bf16.msra.mxu0 0
    %1697 = vmatprep.mubr.bf16.mxu0 0
    %1698 = vmatmul.mubr.bf16.gmra.mrb[0].mxu0 %v1621
    %v1699 = vpop.f32.mrb[0].mxu0
    %v1700 = vadd.f32 0.0, %v1699
    %v1701 = vpop.f32.mrb[0].mxu0
    %v1702 = vadd.f32 0.0, %v1701
    %v1703 = vpop.f32.mrb[0].mxu0
    %v1704 = vadd.f32 0.0, %v1703
    %v1705 = vpop.f32.mrb[0].mxu0
    %v1706 = vadd.f32 0.0, %v1705
    %1707 = vdwg.mxu0
    %v1708 = vadd.f32 %v1613, %v1657
    %v1709 = vadd.f32 %v1614, %v1659
    %v1710 = vadd.f32 %v1615, %v1700
    %v1711 = vadd.f32 %v1616, %v1702
    %v1712 = vadd.f32 %v1617, %v1661
    %v1713 = vadd.f32 %v1618, %v1663
    %v1714 = vadd.f32 %v1619, %v1704
    %v1715 = vadd.f32 %v1620, %v1706
    %v1716 = vxor.u32 %v1708, 2147483648
    %v1717 = vxor.u32 %v1712, 2147483648
    %v1718 = vmul.f32 %v1716, 1.442695
    %v1719 = vpow.pop %v1718
    %v1720 = vmul.f32 %v1717, 1.442695
    %v1721 = vpow.pop %v1720
    %v1722 = vadd.f32 %v1719, 1.0
    %v1723 = vadd.f32 %v1721, 1.0
    %v1724 = vrcp.pop %v1722
    %v1725 = vmul.f32 1.0, %v1724
    %v1726 = vrcp.pop %v1723
    %v1727 = vmul.f32 1.0, %v1726
    %v1728 = vxor.u32 %v1709, 2147483648
    %v1729 = vxor.u32 %v1713, 2147483648
    %v1730 = vmul.f32 %v1728, 1.442695
    %v1731 = vpow.pop %v1730
    %v1732 = vmul.f32 %v1729, 1.442695
    %v1733 = vpow.pop %v1732
    %v1734 = vadd.f32 %v1731, 1.0
    %v1735 = vadd.f32 %v1733, 1.0
    %v1736 = vrcp.pop %v1734
    %v1737 = vmul.f32 1.0, %v1736
    %v1738 = vrcp.pop %v1735
    %v1739 = vmul.f32 1.0, %v1738
    %v1740 = vtanh.pop %v1710
    %v1741 = vtanh.pop %v1714
    %v1742 = vxor.u32 %v1711, 2147483648
    %v1743 = vxor.u32 %v1715, 2147483648
    %v1744 = vmul.f32 %v1742, 1.442695
    %v1745 = vpow.pop %v1744
    %v1746 = vmul.f32 %v1743, 1.442695
    %v1747 = vpow.pop %v1746
    %v1748 = vadd.f32 %v1745, 1.0
    %v1749 = vadd.f32 %v1747, 1.0
    %v1750 = vrcp.pop %v1748
    %v1751 = vmul.f32 1.0, %v1750
    %v1752 = vrcp.pop %v1749
    %v1753 = vmul.f32 1.0, %v1752
    %v1754 = vmul.f32 %v1737, %v1606
    %v1755 = vmul.f32 %v1739, %v1607
    %v1756 = vmul.f32 %v1725, %v1740
    %v1757 = vmul.f32 %v1727, %v1741
    %v1758 = vadd.f32 %v1754, %v1756
    %v1759 = vadd.f32 %v1755, %v1757
    %v1760 = vtanh.pop %v1758
    %v1761 = vtanh.pop %v1759
    %v1762 = vmul.f32 %v1751, %v1760
    %v1763 = vmul.f32 %v1753, %v1761
    %s1764 = scalar_lea.vmem [#allocation2], 448
    %v1765 = vld [vmem:[%s1764] sm:$0xff]
    %v1766 = vld [vmem:[%s1764 + $0x8] sm:$0xff]
    %v1767 = vld [vmem:[%s1764 + $0x10] sm:$0xff]
    %v1768 = vld [vmem:[%s1764 + $0x18] sm:$0xff]
    %v1769 = vld [vmem:[%s1764 + $0x20] sm:$0xff]
    %v1770 = vld [vmem:[%s1764 + $0x28] sm:$0xff]
    %v1771 = vld [vmem:[%s1764 + $0x30] sm:$0xff]
    %v1772 = vld [vmem:[%s1764 + $0x38] sm:$0xff]
    %v1773 = vpack.c.bf16 %v1763, %v1762
    %1774 = vmatprep.subr.bf16.mxu0 %v647
    %1775 = vmatpush1.bf16.msra.mxu0 %v646
    %1776 = vmatprep.subr.bf16.mxu0 %v651
    %1777 = vmatpush1.bf16.msra.mxu0 %v650
    %1778 = vmatprep.subr.bf16.mxu0 %v655
    %1779 = vmatpush1.bf16.msra.mxu0 %v654
    %1780 = vmatprep.subr.bf16.mxu0 %v659
    %1781 = vmatpush1.bf16.msra.mxu0 %v658
    %1782 = vmatprep.subr.bf16.mxu0 %v663
    %1783 = vmatpush1.bf16.msra.mxu0 %v662
    %1784 = vmatprep.subr.bf16.mxu0 %v667
    %1785 = vmatpush1.bf16.msra.mxu0 %v666
    %1786 = vmatprep.subr.bf16.mxu0 %v671
    %1787 = vmatpush1.bf16.msra.mxu0 %v670
    %1788 = vmatprep.subr.bf16.mxu0 %v675
    %1789 = vmatpush1.bf16.msra.mxu0 %v674
    %1790 = vmatprep.subr.bf16.mxu0 0
    %1791 = vmatpush1.bf16.msra.mxu0 0
    %1792 = vmatprep.subr.bf16.mxu0 0
    %1793 = vmatpush1.bf16.msra.mxu0 0
    %1794 = vmatprep.subr.bf16.mxu0 0
    %1795 = vmatpush1.bf16.msra.mxu0 0
    %1796 = vmatprep.subr.bf16.mxu0 0
    %1797 = vmatpush1.bf16.msra.mxu0 0
    %1798 = vmatprep.subr.bf16.mxu0 0
    %1799 = vmatpush1.bf16.msra.mxu0 0
    %1800 = vmatprep.subr.bf16.mxu0 0
    %1801 = vmatpush1.bf16.msra.mxu0 0
    %1802 = vmatprep.subr.bf16.mxu0 0
    %1803 = vmatpush1.bf16.msra.mxu0 0
    %1804 = vmatprep.subr.bf16.mxu0 0
    %1805 = vmatpush1.bf16.msra.mxu0 0
    %1806 = vmatprep.mubr.bf16.mxu0 0
    %1807 = vmatmul.mubr.bf16.gmra.mrb[0].mxu0 %v1773
    %v1808 = vpop.f32.mrb[0].mxu0
    %v1809 = vadd.f32 0.0, %v1808
    %v1810 = vpop.f32.mrb[0].mxu0
    %v1811 = vadd.f32 0.0, %v1810
    %v1812 = vpop.f32.mrb[0].mxu0
    %v1813 = vadd.f32 0.0, %v1812
    %v1814 = vpop.f32.mrb[0].mxu0
    %v1815 = vadd.f32 0.0, %v1814
    %1816 = vdwg.mxu0
    %1817 = vmatprep.subr.bf16.mxu0 %v649
    %1818 = vmatpush1.bf16.msra.mxu0 %v648
    %1819 = vmatprep.subr.bf16.mxu0 %v653
    %1820 = vmatpush1.bf16.msra.mxu0 %v652
    %1821 = vmatprep.subr.bf16.mxu0 %v657
    %1822 = vmatpush1.bf16.msra.mxu0 %v656
    %1823 = vmatprep.subr.bf16.mxu0 %v661
    %1824 = vmatpush1.bf16.msra.mxu0 %v660
    %1825 = vmatprep.subr.bf16.mxu0 %v665
    %1826 = vmatpush1.bf16.msra.mxu0 %v664
    %1827 = vmatprep.subr.bf16.mxu0 %v669
    %1828 = vmatpush1.bf16.msra.mxu0 %v668
    %1829 = vmatprep.subr.bf16.mxu0 %v673
    %1830 = vmatpush1.bf16.msra.mxu0 %v672
    %1831 = vmatprep.subr.bf16.mxu0 %v677
    %1832 = vmatpush1.bf16.msra.mxu0 %v676
    %1833 = vmatprep.subr.bf16.mxu0 0
    %1834 = vmatpush1.bf16.msra.mxu0 0
    %1835 = vmatprep.subr.bf16.mxu0 0
    %1836 = vmatpush1.bf16.msra.mxu0 0
    %1837 = vmatprep.subr.bf16.mxu0 0
    %1838 = vmatpush1.bf16.msra.mxu0 0
    %1839 = vmatprep.subr.bf16.mxu0 0
    %1840 = vmatpush1.bf16.msra.mxu0 0
    %1841 = vmatprep.subr.bf16.mxu0 0
    %1842 = vmatpush1.bf16.msra.mxu0 0
    %1843 = vmatprep.subr.bf16.mxu0 0
    %1844 = vmatpush1.bf16.msra.mxu0 0
    %1845 = vmatprep.subr.bf16.mxu0 0
    %1846 = vmatpush1.bf16.msra.mxu0 0
    %1847 = vmatprep.subr.bf16.mxu0 0
    %1848 = vmatpush1.bf16.msra.mxu0 0
    %1849 = vmatprep.mubr.bf16.mxu0 0
    %1850 = vmatmul.mubr.bf16.gmra.mrb[0].mxu0 %v1773
    %v1851 = vpop.f32.mrb[0].mxu0
    %v1852 = vadd.f32 0.0, %v1851
    %v1853 = vpop.f32.mrb[0].mxu0
    %v1854 = vadd.f32 0.0, %v1853
    %v1855 = vpop.f32.mrb[0].mxu0
    %v1856 = vadd.f32 0.0, %v1855
    %v1857 = vpop.f32.mrb[0].mxu0
    %v1858 = vadd.f32 0.0, %v1857
    %1859 = vdwg.mxu0
    %v1860 = vadd.f32 %v1765, %v1809
    %v1861 = vadd.f32 %v1766, %v1811
    %v1862 = vadd.f32 %v1767, %v1852
    %v1863 = vadd.f32 %v1768, %v1854
    %v1864 = vadd.f32 %v1769, %v1813
    %v1865 = vadd.f32 %v1770, %v1815
    %v1866 = vadd.f32 %v1771, %v1856
    %v1867 = vadd.f32 %v1772, %v1858
    %v1868 = vxor.u32 %v1860, 2147483648
    %v1869 = vxor.u32 %v1864, 2147483648
    %v1870 = vmul.f32 %v1868, 1.442695
    %v1871 = vpow.pop %v1870
    %v1872 = vmul.f32 %v1869, 1.442695
    %v1873 = vpow.pop %v1872
    %v1874 = vadd.f32 %v1871, 1.0
    %v1875 = vadd.f32 %v1873, 1.0
    %v1876 = vrcp.pop %v1874
    %v1877 = vmul.f32 1.0, %v1876
    %v1878 = vrcp.pop %v1875
    %v1879 = vmul.f32 1.0, %v1878
    %v1880 = vxor.u32 %v1861, 2147483648
    %v1881 = vxor.u32 %v1865, 2147483648
    %v1882 = vmul.f32 %v1880, 1.442695
    %v1883 = vpow.pop %v1882
    %v1884 = vmul.f32 %v1881, 1.442695
    %v1885 = vpow.pop %v1884
    %v1886 = vadd.f32 %v1883, 1.0
    %v1887 = vadd.f32 %v1885, 1.0
    %v1888 = vrcp.pop %v1886
    %v1889 = vmul.f32 1.0, %v1888
    %v1890 = vrcp.pop %v1887
    %v1891 = vmul.f32 1.0, %v1890
    %v1892 = vtanh.pop %v1862
    %v1893 = vtanh.pop %v1866
    %v1894 = vxor.u32 %v1863, 2147483648
    %v1895 = vxor.u32 %v1867, 2147483648
    %v1896 = vmul.f32 %v1894, 1.442695
    %v1897 = vpow.pop %v1896
    %v1898 = vmul.f32 %v1895, 1.442695
    %v1899 = vpow.pop %v1898
    %v1900 = vadd.f32 %v1897, 1.0
    %v1901 = vadd.f32 %v1899, 1.0
    %v1902 = vrcp.pop %v1900
    %v1903 = vmul.f32 1.0, %v1902
    %v1904 = vrcp.pop %v1901
    %v1905 = vmul.f32 1.0, %v1904
    %v1906 = vmul.f32 %v1889, %v1758
    %v1907 = vmul.f32 %v1891, %v1759
    %v1908 = vmul.f32 %v1877, %v1892
    %v1909 = vmul.f32 %v1879, %v1893
    %v1910 = vadd.f32 %v1906, %v1908
    %v1911 = vadd.f32 %v1907, %v1909
    %v1912 = vtanh.pop %v1910
    %v1913 = vtanh.pop %v1911
    %v1914 = vmul.f32 %v1903, %v1912
    %v1915 = vmul.f32 %v1905, %v1913
    %1916 = vst [vmem:[#allocation3] sm:$0xff] %v1914
    %1917 = vst [vmem:[#allocation3 + $0x8] sm:$0xff] %v1915
    %1918 = vst [vmem:[#allocation4] sm:$0xff] %v1910
    %1919 = vst [vmem:[#allocation4 + $0x8] sm:$0xff] %v1911
    // Predicated region
    $region46: #{tpu_custom_call.1} parent=1 // pred_check
      %p1920 = pneg %p80
    $region47: #{tpu_custom_call.1} parent=1 // pred_check_branch
      %1922 = sbr.rel (%p1920) target = $region49
    $region48: #{tpu_custom_call.1} parent=1 // pred_region
      %v1923 = vpack.c.bf16 %v1915, %v1914
      %v1924 = vld [vmem:[#allocation11] sm:$0xf]
      %v1925 = vld [vmem:[#allocation11 + $0x4] sm:$0xf]
      %v1926 = vld [vmem:[#allocation11 + $0x8] sm:$0xf]
      %v1927 = vld [vmem:[#allocation11 + $0xc] sm:$0xf]
      %v1928 = vld [vmem:[#allocation11 + $0x10] sm:$0xf]
      %v1929 = vld [vmem:[#allocation11 + $0x14] sm:$0xf]
      %v1930 = vld [vmem:[#allocation11 + $0x18] sm:$0xf]
      %v1931 = vld [vmem:[#allocation11 + $0x1c] sm:$0xf]
      %v1932 = vld [vmem:[#allocation11 + $0x20] sm:$0xf]
      %v1933 = vld [vmem:[#allocation11 + $0x24] sm:$0xf]
      %v1934 = vld [vmem:[#allocation11 + $0x28] sm:$0xf]
      %v1935 = vld [vmem:[#allocation11 + $0x2c] sm:$0xf]
      %v1936 = vld [vmem:[#allocation11 + $0x30] sm:$0xf]
      %v1937 = vld [vmem:[#allocation11 + $0x34] sm:$0xf]
      %v1938 = vld [vmem:[#allocation11 + $0x38] sm:$0xf]
      %v1939 = vld [vmem:[#allocation11 + $0x3c] sm:$0xf]
      %v1940 = vld [vmem:[%s5] sm:$0x1]
      %v1942 = vlaneseq
      %v1943 = vshrl.u32 %v1942, 7
      %v1944 = vsub.s32 0, %v1943
      %v1945 = vrot.slane %v1940, %v1944
      %v1963 = vunpack.c.l.b16 %v1924
      %v1964 = vunpack.c.l.b16 %v1925
      %v1965 = vunpack.c.l.b16 %v1926
      %v1966 = vunpack.c.l.b16 %v1927
      %v1967 = vunpack.c.l.b16 %v1928
      %v1968 = vunpack.c.l.b16 %v1929
      %v1969 = vunpack.c.l.b16 %v1930
      %v1970 = vunpack.c.l.b16 %v1931
      %v1971 = vunpack.c.l.b16 %v1932
      %v1972 = vunpack.c.l.b16 %v1933
      %v1973 = vunpack.c.l.b16 %v1934
      %v1974 = vunpack.c.l.b16 %v1935
      %v1975 = vunpack.c.l.b16 %v1936
      %v1976 = vunpack.c.l.b16 %v1937
      %v1977 = vunpack.c.l.b16 %v1938
      %v1978 = vunpack.c.l.b16 %v1939
      %v1979 = vpack.c.b16 %v1964, %v1963
      %v1980 = vpack.c.b16 %v1966, %v1965
      %v1981 = vpack.c.b16 %v1968, %v1967
      %v1982 = vpack.c.b16 %v1970, %v1969
      %v1983 = vpack.c.b16 %v1972, %v1971
      %v1984 = vpack.c.b16 %v1974, %v1973
      %v1985 = vpack.c.b16 %v1976, %v1975
      %v1986 = vpack.c.b16 %v1978, %v1977
      %1995 = vmatprep.subr.bf16.mxu0 0
      %1996 = vmatpush1.bf16.msra.mxu0 %v1979
      %1997 = vmatprep.subr.bf16.mxu0 0
      %1998 = vmatpush1.bf16.msra.mxu0 %v1980
      %1999 = vmatprep.subr.bf16.mxu0 0
      %2000 = vmatpush1.bf16.msra.mxu0 %v1981
      %2001 = vmatprep.subr.bf16.mxu0 0
      %2002 = vmatpush1.bf16.msra.mxu0 %v1982
      %2003 = vmatprep.subr.bf16.mxu0 0
      %2004 = vmatpush1.bf16.msra.mxu0 %v1983
      %2005 = vmatprep.subr.bf16.mxu0 0
      %2006 = vmatpush1.bf16.msra.mxu0 %v1984
      %2007 = vmatprep.subr.bf16.mxu0 0
      %2008 = vmatpush1.bf16.msra.mxu0 %v1985
      %2009 = vmatprep.subr.bf16.mxu0 0
      %2010 = vmatpush1.bf16.msra.mxu0 %v1986
      %2011 = vmatprep.subr.bf16.mxu0 0
      %2012 = vmatpush1.bf16.msra.mxu0 0
      %2013 = vmatprep.subr.bf16.mxu0 0
      %2014 = vmatpush1.bf16.msra.mxu0 0
      %2015 = vmatprep.subr.bf16.mxu0 0
      %2016 = vmatpush1.bf16.msra.mxu0 0
      %2017 = vmatprep.subr.bf16.mxu0 0
      %2018 = vmatpush1.bf16.msra.mxu0 0
      %2019 = vmatprep.subr.bf16.mxu0 0
      %2020 = vmatpush1.bf16.msra.mxu0 0
      %2021 = vmatprep.subr.bf16.mxu0 0
      %2022 = vmatpush1.bf16.msra.mxu0 0
      %2023 = vmatprep.subr.bf16.mxu0 0
      %2024 = vmatpush1.bf16.msra.mxu0 0
      %2025 = vmatprep.subr.bf16.mxu0 0
      %2026 = vmatpush1.bf16.msra.mxu0 0
      %2027 = vmatprep.mubr.bf16.mxu0 0
      %2028 = vmatmul.mubr.bf16.gmra.mrb[0].mxu0 %v1923
      %v2029 = vpop.f32.mrb[0].mxu0
      %v2030 = vadd.f32 %v1945, %v2029
      %v2031 = vpop.f32.mrb[0].mxu0
      %v2032 = vpop.f32.mrb[0].mxu0
      %v2033 = vadd.f32 %v1945, %v2032
      %v2034 = vpop.f32.mrb[0].mxu0
      %2035 = vdwg.mxu0
      %2036 = vst [vmem:[#allocation13] sm:$0xff] %v2030
      %2037 = vst [vmem:[#allocation13 + $0x8] sm:$0xff] %v2033
    $region49: #{tpu_custom_call.1} parent=1 // pred_fallthru
      _
    // Predicated region
    $region50: #{tpu_custom_call.1} parent=1 // pred_check
      _
    $region51: #{tpu_custom_call.1} parent=1 // pred_check_branch
      %2039 = sbr.rel (0) target = $region53
    $region52: #{tpu_custom_call.1} parent=1 // pred_region
      %s2041 = ssub.s32 256, 256
      %2042 = vsyncadd [#allocation7], %s2041
      %s2043 = sshll.u32 [#allocation13], 4
      %s2044 = int_to_ptr.vmem [resolvable:$true] %s2043
      %2049 = dma.vmem_to_hbm [thread:$0]  %s2044, 256, %s6, [#allocation7], 128, 128, 8
    $region53: #{tpu_custom_call.1} parent=1 // pred_fallthru
      _
    // Predicated region
    $region54: #{tpu_custom_call.1} parent=1 // pred_check
      _
    $region55: #{tpu_custom_call.1} parent=1 // pred_check_branch
      %2051 = sbr.rel (0) target = $region57
    $region56: #{tpu_custom_call.1} parent=1 // pred_region
      %2052 = dma.done [#allocation7], 256
    $region57: #{tpu_custom_call.1} parent=1 // pred_fallthru
      _
    %2053 = vsyncpa [#allocation6], 1
    %2054 = vsyncpa [#allocation9], 1
    %2055 = vsyncpa [#allocation12], 1
    %2056 = vsyncpa [#allocation7], 1

</llo_original>
